<compile_context>
chip_gen: v5e
topology: v5e:2x2
jax: 0.10.0
libtpu: 0.0.40
codegen_flags: <defaults>
</compile_context>

<pallas_src>
import functools

import jax
import jax.numpy as jnp
from jax import lax
from jax.experimental import pallas as pl
from jax.experimental.pallas import tpu as pltpu


# ----------------------------------------------------------------------------
# Fused 3x3 conv (+bias +ReLU) kernel: im2col-free, split-Cin capable.
# ----------------------------------------------------------------------------
def _conv3x3_kernel(*refs, cins, wp, tm, apply_relu, kchunk=256):
    """refs = (x2_0, ..., x2_{k-1}, w, b, out).

    x2_i : (ri, cin_i) f32, zero-padded input flattened so that row
           (n*(H+2)+hp)*(W+2)+wp holds padded pixel (hp, wp) of image n.
           Tap (ky, kx) is then the uniform row shift  ky*wp + kx.
    w    : (3, 3, sum(cins), tn) HWIO bf16 weight block (Cout tile j).
    b    : (1, tn) f32 bias block.
    out  : (tm, tn) rows [m*tm, (m+1)*tm) of the padded-layout output; the
           wrapper slices the valid interior afterwards.
    """
    num_in = len(cins)
    x_refs = refs[:num_in]
    w_ref = refs[num_in]
    b_ref = refs[num_in + 1]
    o_ref = refs[num_in + 2]
    tn = o_ref.shape[-1]

    base = pl.program_id(1) * tm                      # row-tile offset (grid axis m)
    if tm % 8 == 0:
        base = pl.multiple_of(base, 8)

    acc = jnp.zeros((tm, tn), jnp.float32)
    for ky in range(3):
        for kx in range(3):
            shift = ky * wp + kx                      # static row shift per tap
            c0 = 0
            for i, cin in enumerate(cins):            # split-K over virtual concat
                for k0 in range(0, cin, kchunk):      # chunk Cin to <=256 per dot
                    ks = min(kchunk, cin - k0)
                    lhs = x_refs[i][pl.ds(base + shift, tm), pl.ds(k0, ks)]
                    rhs = w_ref[ky, kx, pl.ds(c0 + k0, ks), :]
                    acc += jnp.dot(lhs.astype(jnp.bfloat16), rhs,
                                   preferred_element_type=jnp.float32)
                c0 += cin
    acc = acc + b_ref[...]
    if apply_relu:
        acc = jnp.maximum(acc, 0.0)
    o_ref[...] = acc.astype(o_ref.dtype)


def conv3x3_relu(xs, w_hwio, b, *, apply_relu=True):
    """3x3 conv, stride 1, padding 1 (+bias, +ReLU).

    `xs` is a list of NHWC f32 tensors whose channels are *virtually*
    concatenated (decoder skip connections): the concat is never materialized,
    the kernel slices the matching rows out of the weight block instead.
    `w_hwio` is bf16 (3, 3, sum(cin), cout) with cout a multiple of 128.
    """
    n, h, wd, _ = xs[0].shape
    cins = tuple(int(x.shape[-1]) for x in xs)
    cin_sum = sum(cins)
    assert cin_sum == int(w_hwio.shape[2]), (cins, w_hwio.shape)
    cout = int(w_hwio.shape[-1])

    wp = wd + 2
    rows_img = (h + 2) * wp
    rv = n * rows_img                    # rows holding every real output pixel
    ri = (n + 1) * rows_img              # + one all-zero trailing image (tap margin)

    if cout % 256 == 0:
        tn = 256
    elif cout % 128 == 0:
        tn = 128
    else:
        tn = cout                        # generic fallback (unused in this net)
    if rv >= 128:
        tm = 128
        rows_out = pl.cdiv(rv, tm) * tm  # junk tail rows are computed & discarded
    else:
        tm = rv
        rows_out = rv
    # taps of the last computed row must stay inside the padded input rows
    assert rows_out + 2 * wp + 2 <= ri, (rows_out, wp, ri)

    # conv zero padding + one extra zero image so tap row shifts stay in bounds;
    # the flatten reshape is free.
    x2s = [jnp.pad(x, ((0, 1), (1, 1), (1, 1), (0, 0))).reshape(ri, c)
           for x, c in zip(xs, cins)]

    # Scoped-VMEM budget: grid-invariant resident inputs counted once; only the
    # j/m-indexed weight, bias and output blocks are double-buffered.
    resident = sum(ri * c * 4 for c in cins)
    blk = 9 * cin_sum * tn * 2 + tn * 4 + tm * tn * 4
    vmem = int(min(48 << 20, max(16 << 20, resident + 2 * blk + (8 << 20))))

    kernel = functools.partial(_conv3x3_kernel, cins=cins, wp=wp, tm=tm,
                               apply_relu=apply_relu)
    in_specs = [pl.BlockSpec((ri, c), lambda j, m: (0, 0)) for c in cins]
    in_specs += [
        pl.BlockSpec((3, 3, cin_sum, tn), lambda j, m: (0, 0, 0, j)),
        pl.BlockSpec((1, tn), lambda j, m: (0, j)),
    ]
    out = pl.pallas_call(
        kernel,
        out_shape=jax.ShapeDtypeStruct((rows_out, cout), xs[0].dtype),
        grid_spec=pltpu.PrefetchScalarGridSpec(
            num_scalar_prefetch=0,
            # j (Cout tile) outer so each weight block is DMA'd once; m inner.
            grid=(cout // tn, rows_out // tm),
            in_specs=in_specs,
            out_specs=pl.BlockSpec((tm, tn), lambda j, m: (m, j)),
        ),
        compiler_params=pltpu.CompilerParams(
            dimension_semantics=("parallel", "parallel"),
            vmem_limit_bytes=vmem,
        ),
    )(*x2s, w_hwio, b.reshape(1, cout))

    # Drop the junk (padding-position / tail-margin) rows and return to NHWC.
    return out[:rv].reshape(n, h + 2, wp, cout)[:, :h, :wd, :]


# ----------------------------------------------------------------------------
# 2x2 max pool: single kernel, single HBM read, no strided ref indexing.
# ----------------------------------------------------------------------------
def _max_pool_kernel(x_ref, o_ref):
    x = x_ref[...]                                   # (n, h2, 2, w2, 2, c)
    a = jnp.maximum(x[:, :, 0, :, 0, :], x[:, :, 0, :, 1, :])
    b = jnp.maximum(x[:, :, 1, :, 0, :], x[:, :, 1, :, 1, :])
    o_ref[...] = jnp.maximum(a, b)


def max_pool_2x2(x):
    """2x2 / stride-2 max pool, x: (N, H, W, C) NHWC (assumes even H, W)."""
    n, h, wd, c = x.shape
    assert h % 2 == 0 and wd % 2 == 0
    xr = x.reshape(n, h // 2, 2, wd // 2, 2, c)      # free metadata reshape in XLA
    return pl.pallas_call(
        _max_pool_kernel,
        out_shape=jax.ShapeDtypeStruct((n, h // 2, wd // 2, c), x.dtype),
    )(xr)


# ----------------------------------------------------------------------------
# 1x1 conv (final layer) and nearest upsample
# ----------------------------------------------------------------------------
def _matmul_bias_kernel(x_ref, w_ref, b_ref, o_ref):
    o_ref[...] = (jnp.dot(x_ref[...].astype(jnp.bfloat16), w_ref[...],
                          preferred_element_type=jnp.float32)
                  + b_ref[...]).astype(o_ref.dtype)


def conv1x1(x, w_io, b):
    """1x1 conv (the final `out` layer), no activation.  `w_io` is bf16 with
    Cin/Cout already padded to 128, so stores are lane-dense; the tiny valid
    channel slice is taken by the caller."""
    n, h, wd, cin = x.shape
    cout = int(w_io.shape[-1])
    m = n * h * wd
    tm = 128 if m % 128 == 0 else m
    out = pl.pallas_call(
        _matmul_bias_kernel,
        out_shape=jax.ShapeDtypeStruct((m, cout), x.dtype),
        grid_spec=pltpu.PrefetchScalarGridSpec(
            num_scalar_prefetch=0,
            grid=(m // tm,),
            in_specs=[pl.BlockSpec((tm, cin), lambda i: (i, 0)),
                      pl.BlockSpec((cin, cout), lambda i: (0, 0)),
                      pl.BlockSpec((1, cout), lambda i: (0, 0))],
            out_specs=pl.BlockSpec((tm, cout), lambda i: (i, 0)),
        ),
        compiler_params=pltpu.CompilerParams(
            dimension_semantics=("parallel",)),
    )(x.reshape(m, cin), w_io, b.reshape(1, cout))
    return out.reshape(n, h, wd, cout)


def upsample_nearest(x, size):
    # TODO(synk): fold the exact-2x nearest upsample into the decoder conv's
    # input row mapping instead of materializing the 4x-larger tensor.
    n, h, wd, c = x.shape
    th, tw = int(size[0]), int(size[1])
    if th == 2 * h and tw == 2 * wd:
        y = jnp.broadcast_to(x[:, :, None, :, None, :], (n, h, 2, wd, 2, c))
        return y.reshape(n, th, tw, c)
    ri = jnp.arange(th) * h // th          # torch 'nearest': floor(i * in/out)
    rj = jnp.arange(tw) * wd // tw
    return x[:, ri][:, :, rj]


# ----------------------------------------------------------------------------
# Parameters (deterministic synthetic init; matches PyTorch module shapes)
# ----------------------------------------------------------------------------
def _conv_init(key, kh, kw, cin, cout):
    kw_key, kb_key = jax.random.split(key)
    fan_in = cin * kh * kw
    bound = 1.0 / jnp.sqrt(jnp.float32(fan_in))
    w = jax.random.uniform(kw_key, (kh, kw, cin, cout), jnp.float32, -bound, bound)
    b = jax.random.uniform(kb_key, (cout,), jnp.float32, -bound, bound)
    return w, b


def init_block(key, cin, cmid, cout):
    k1, k2 = jax.random.split(key)
    w1, b1 = _conv_init(k1, 3, 3, cin, cmid)
    w2, b2 = _conv_init(k2, 3, 3, cmid, cout)
    return {"w1": w1, "b1": b1, "w2": w2, "b2": b2}


def init_unet(key, in_channels, out_channels):
    keys = jax.random.split(key, 10)
    params = {
        "enc1": init_block(keys[0], in_channels, 64, 64),
        "enc2": init_block(keys[1], 64, 128, 128),
        "enc3": init_block(keys[2], 128, 256, 256),
        "enc4": init_block(keys[3], 256, 512, 512),
        "center": init_block(keys[4], 512, 1024, 512),
        "dec4": init_block(keys[5], 1024, 512, 256),
        "dec3": init_block(keys[6], 512, 256, 128),
        "dec2": init_block(keys[7], 256, 128, 64),
        "dec1": init_block(keys[8], 128, 64, 64),
    }
    wo, bo = _conv_init(keys[9], 1, 1, 64, out_channels)
    params["out"] = {"w": wo.reshape(64, out_channels), "b": bo}
    return params


# ----------------------------------------------------------------------------
# Parameter preparation: bf16 weights, channel padding to multiples of 128.
# ----------------------------------------------------------------------------
def _pad_to128(c):
    return max(128, ((c + 127) // 128) * 128)


def _prep_conv(w, b, in_splits, cout_pad):
    """w: (3,3,sum_real_cin,cout) f32.  in_splits: [(real_cin, padded_cin)] per
    (virtually concatenated) input.  Pads each Cin piece and Cout with zeros,
    casts weights to bf16 (biases stay f32)."""
    cout = int(w.shape[-1])
    pieces, c0 = [], 0
    for real, padded in in_splits:
        piece = w[:, :, c0:c0 + real, :]
        piece = jnp.pad(piece, ((0, 0), (0, 0),
                                (0, padded - real), (0, cout_pad - cout)))
        pieces.append(piece)
        c0 += real
    w_p = jnp.concatenate(pieces, axis=2) if len(pieces) > 1 else pieces[0]
    b_p = jnp.pad(b, (0, cout_pad - cout))
    return w_p.astype(jnp.bfloat16), b_p.astype(jnp.float32)


def _prep_block(p, in_splits, cmid, cout):
    cmid_p, cout_p = _pad_to128(cmid), _pad_to128(cout)
    w1, b1 = _prep_conv(p["w1"], p["b1"], in_splits, cmid_p)
    w2, b2 = _prep_conv(p["w2"], p["b2"], [(cmid, cmid_p)], cout_p)
    return {"w1": w1, "b1": b1, "w2": w2, "b2": b2}


def prepare_params(params, in_channels, out_channels):
    prep = {
        "enc1": _prep_block(params["enc1"], [(in_channels, in_channels)], 64, 64),
        "enc2": _prep_block(params["enc2"], [(64, 128)], 128, 128),
        "enc3": _prep_block(params["enc3"], [(128, 128)], 256, 256),
        "enc4": _prep_block(params["enc4"], [(256, 256)], 512, 512),
        "center": _prep_block(params["center"], [(512, 512)], 1024, 512),
        "dec4": _prep_block(params["dec4"], [(512, 512), (512, 512)], 512, 256),
        "dec3": _prep_block(params["dec3"], [(256, 256), (256, 256)], 256, 128),
        "dec2": _prep_block(params["dec2"], [(128, 128), (128, 128)], 128, 64),
        "dec1": _prep_block(params["dec1"], [(64, 128), (64, 128)], 64, 64),
    }
    cout_p = _pad_to128(out_channels)
    wo = jnp.pad(params["out"]["w"], ((0, 128 - 64), (0, cout_p - out_channels)))
    bo = jnp.pad(params["out"]["b"], (0, cout_p - out_channels))
    prep["out"] = {"w": wo.astype(jnp.bfloat16), "b": bo.astype(jnp.float32)}
    return prep


# ----------------------------------------------------------------------------
# Forward pass (batch_norm=False, upscale_mode='nearest', as in module defaults)
# ----------------------------------------------------------------------------
def block_forward(p, xs):
    # TODO(synk): conv1+conv2 of a block could be fused into one pallas_call
    # (keep the conv1 tile resident in VMEM); kept as two calls here.
    x = conv3x3_relu(xs, p["w1"], p["b1"])
    x = conv3x3_relu([x], p["w2"], p["b2"])
    return x


def unet_forward(prep, x_nchw, out_channels):
    x = jnp.transpose(x_nchw, (0, 2, 3, 1))          # NCHW -> NHWC
    enc1 = block_forward(prep["enc1"], [x])
    enc2 = block_forward(prep["enc2"], [max_pool_2x2(enc1)])
    enc3 = block_forward(prep["enc3"], [max_pool_2x2(enc2)])
    enc4 = block_forward(prep["enc4"], [max_pool_2x2(enc3)])
    center = block_forward(prep["center"], [max_pool_2x2(enc4)])
    # Decoder: the channel concat is virtual -- both tensors feed one conv call.
    dec4 = block_forward(prep["dec4"],
                         [upsample_nearest(center, enc4.shape[1:3]), enc4])
    dec3 = block_forward(prep["dec3"],
                         [upsample_nearest(dec4, enc3.shape[1:3]), enc3])
    dec2 = block_forward(prep["dec2"],
                         [upsample_nearest(dec3, enc2.shape[1:3]), enc2])
    dec1 = block_forward(prep["dec1"],
                         [upsample_nearest(dec2, enc1.shape[1:3]), enc1])
    out = conv1x1(dec1, prep["out"]["w"], prep["out"]["b"])
    out = out[..., :out_channels]                    # drop lane-padding channels
    return jnp.transpose(out, (0, 3, 1, 2))          # NHWC -> NCHW


# ----------------------------------------------------------------------------
# Main
# ----------------------------------------------------------------------------
if __name__ == "__main__":
    IN_CH, OUT_CH = 4, 3
    N, H, W = 2, 16, 16

    x = jax.random.normal(jax.random.PRNGKey(0), (N, IN_CH, H, W), jnp.float32)
    params = init_unet(jax.random.PRNGKey(42), IN_CH, OUT_CH)
    prep = prepare_params(params, IN_CH, OUT_CH)

    # --- sanity check the fused conv kernel against an XLA conv on one layer.
    # Reference uses the same bf16-rounded operands, so only the f32
    # accumulation order differs -> tight tolerance.
    x_nhwc = jnp.transpose(x, (0, 2, 3, 1))
    got = conv3x3_relu([x_nhwc], prep["enc1"]["w1"], prep["enc1"]["b1"])
    w_r = prep["enc1"]["w1"].astype(jnp.float32)
    x_r = x_nhwc.astype(jnp.bfloat16).astype(jnp.float32)
    ref = jax.nn.relu(
        lax.conv_general_dilated(
            x_r, w_r, window_strides=(1, 1), padding=((1, 1), (1, 1)),
            dimension_numbers=("NHWC", "HWIO", "NHWC"))
        + prep["enc1"]["b1"])
    assert jnp.allclose(got, ref, atol=1e-4, rtol=1e-4), "conv kernel mismatch"
    assert bool(jnp.all(got[..., 64:] == 0.0)), "padded channels must be zero"

    # Split-Cin (virtual concat) path must match the single-input path.
    got2 = conv3x3_relu([x_nhwc[..., :2], x_nhwc[..., 2:]],
                        prep["enc1"]["w1"], prep["enc1"]["b1"])
    assert jnp.allclose(got2, got, atol=1e-5, rtol=1e-5), "split-K mismatch"

    # Max-pool kernel vs. plain strided-slice reference.
    pooled = max_pool_2x2(got)
    ref_pool = jnp.maximum(
        jnp.maximum(got[:, 0::2, 0::2, :], got[:, 0::2, 1::2, :]),
        jnp.maximum(got[:, 1::2, 0::2, :], got[:, 1::2, 1::2, :]))
    assert jnp.allclose(pooled, ref_pool, atol=1e-6), "max-pool mismatch"

    fwd = jax.jit(lambda p, xx: unet_forward(p, xx, OUT_CH))
    out = fwd(prep, x)
    out = jax.block_until_ready(out)

    assert out.shape == (N, OUT_CH, H, W), out.shape
    assert bool(jnp.all(jnp.isfinite(out)))
    print("KERNEL_OK")
</pallas_src>

<mosaic_0001>
module attributes {stable_mosaic.version = 11 : i64} {
  func.func @_conv3x3_kernel(%arg0: i32, %arg1: i32, %arg2: memref<972x4xf32, #tpu.memory_space<vmem>>, %arg3: memref<3x3x4x128xbf16, #tpu.memory_space<vmem>>, %arg4: memref<1x128xf32, #tpu.memory_space<vmem>>, %arg5: memref<128x128xf32, #tpu.memory_space<vmem>>) attributes {dimension_semantics = [#tpu.dimension_semantics<parallel>, #tpu.dimension_semantics<parallel>], iteration_bounds = array<i64: 1, 6>, scalar_prefetch = 0 : i64, scratch_operands = 0 : i64, tpu.core_type = #tpu.core_type<tc>, window_params = [{pipeline_mode = #tpu.pipeline_mode<synchronous>, transform_indices = @transform_0, window_bounds = array<i64: 972, 4>}, {transform_indices = @transform_1, window_bounds = array<i64: 3, 3, 4, 128>}, {transform_indices = @transform_2, window_bounds = array<i64: 1, 128>}, {transform_indices = @transform_3, window_bounds = array<i64: 128, 128>}]} {
    %c128_i32 = arith.constant 128 : i32
    %0 = arith.muli %arg1, %c128_i32 : i32
    %1 = tpu.assume_multiple %0, 8 : i32
    %cst = arith.constant 0.000000e+00 : f32
    %2 = vector.broadcast %cst : f32 to vector<128x128xf32>
    %c0_i32 = arith.constant 0 : i32
    %3 = arith.addi %1, %c0_i32 : i32
    %4 = arith.index_cast %3 : i32 to index
    %c0 = arith.constant 0 : index
    %5 = vector.load %arg2[%4, %c0] : memref<972x4xf32, #tpu.memory_space<vmem>>, vector<128x4xf32>
    %c0_0 = arith.constant 0 : index
    %c0_1 = arith.constant 0 : index
    %c0_2 = arith.constant 0 : index
    %c0_3 = arith.constant 0 : index
    %6 = vector.load %arg3[%c0_0, %c0_1, %c0_2, %c0_3] : memref<3x3x4x128xbf16, #tpu.memory_space<vmem>>, vector<1x1x4x128xbf16>
    %7 = vector.shape_cast %6 : vector<1x1x4x128xbf16> to vector<4x128xbf16>
    %8 = arith.truncf %5 : vector<128x4xf32> to vector<128x4xbf16>
    %cst_4 = arith.constant dense<0.000000e+00> : vector<128x128xf32>
    %9 = tpu.matmul %8, %7, %cst_4 {dimension_numbers = #tpu.dot_dimension_numbers<[1], [0], [0], [1], [0, 0, 1, 1], [], []>} : vector<128x4xbf16>, vector<4x128xbf16>, vector<128x128xf32> -> vector<128x128xf32>
    %10 = arith.addf %2, %9 : vector<128x128xf32>
    %c1_i32 = arith.constant 1 : i32
    %11 = arith.addi %1, %c1_i32 : i32
    %12 = arith.index_cast %11 : i32 to index
    %c0_5 = arith.constant 0 : index
    %13 = vector.load %arg2[%12, %c0_5] : memref<972x4xf32, #tpu.memory_space<vmem>>, vector<128x4xf32>
    %c0_6 = arith.constant 0 : index
    %c1 = arith.constant 1 : index
    %c0_7 = arith.constant 0 : index
    %c0_8 = arith.constant 0 : index
    %14 = vector.load %arg3[%c0_6, %c1, %c0_7, %c0_8] : memref<3x3x4x128xbf16, #tpu.memory_space<vmem>>, vector<1x1x4x128xbf16>
    %15 = vector.shape_cast %14 : vector<1x1x4x128xbf16> to vector<4x128xbf16>
    %16 = arith.truncf %13 : vector<128x4xf32> to vector<128x4xbf16>
    %cst_9 = arith.constant dense<0.000000e+00> : vector<128x128xf32>
    %17 = tpu.matmul %16, %15, %cst_9 {dimension_numbers = #tpu.dot_dimension_numbers<[1], [0], [0], [1], [0, 0, 1, 1], [], []>} : vector<128x4xbf16>, vector<4x128xbf16>, vector<128x128xf32> -> vector<128x128xf32>
    %18 = arith.addf %10, %17 : vector<128x128xf32>
    %c2_i32 = arith.constant 2 : i32
    %19 = arith.addi %1, %c2_i32 : i32
    %20 = arith.index_cast %19 : i32 to index
    %c0_10 = arith.constant 0 : index
    %21 = vector.load %arg2[%20, %c0_10] : memref<972x4xf32, #tpu.memory_space<vmem>>, vector<128x4xf32>
    %c0_11 = arith.constant 0 : index
    %c2 = arith.constant 2 : index
    %c0_12 = arith.constant 0 : index
    %c0_13 = arith.constant 0 : index
    %22 = vector.load %arg3[%c0_11, %c2, %c0_12, %c0_13] : memref<3x3x4x128xbf16, #tpu.memory_space<vmem>>, vector<1x1x4x128xbf16>
    %23 = vector.shape_cast %22 : vector<1x1x4x128xbf16> to vector<4x128xbf16>
    %24 = arith.truncf %21 : vector<128x4xf32> to vector<128x4xbf16>
    %cst_14 = arith.constant dense<0.000000e+00> : vector<128x128xf32>
    %25 = tpu.matmul %24, %23, %cst_14 {dimension_numbers = #tpu.dot_dimension_numbers<[1], [0], [0], [1], [0, 0, 1, 1], [], []>} : vector<128x4xbf16>, vector<4x128xbf16>, vector<128x128xf32> -> vector<128x128xf32>
    %26 = arith.addf %18, %25 : vector<128x128xf32>
    %c18_i32 = arith.constant 18 : i32
    %27 = arith.addi %1, %c18_i32 : i32
    %28 = arith.index_cast %27 : i32 to index
    %c0_15 = arith.constant 0 : index
    %29 = vector.load %arg2[%28, %c0_15] : memref<972x4xf32, #tpu.memory_space<vmem>>, vector<128x4xf32>
    %c1_16 = arith.constant 1 : index
    %c0_17 = arith.constant 0 : index
    %c0_18 = arith.constant 0 : index
    %c0_19 = arith.constant 0 : index
    %30 = vector.load %arg3[%c1_16, %c0_17, %c0_18, %c0_19] : memref<3x3x4x128xbf16, #tpu.memory_space<vmem>>, vector<1x1x4x128xbf16>
    %31 = vector.shape_cast %30 : vector<1x1x4x128xbf16> to vector<4x128xbf16>
    %32 = arith.truncf %29 : vector<128x4xf32> to vector<128x4xbf16>
    %cst_20 = arith.constant dense<0.000000e+00> : vector<128x128xf32>
    %33 = tpu.matmul %32, %31, %cst_20 {dimension_numbers = #tpu.dot_dimension_numbers<[1], [0], [0], [1], [0, 0, 1, 1], [], []>} : vector<128x4xbf16>, vector<4x128xbf16>, vector<128x128xf32> -> vector<128x128xf32>
    %34 = arith.addf %26, %33 : vector<128x128xf32>
    %c19_i32 = arith.constant 19 : i32
    %35 = arith.addi %1, %c19_i32 : i32
    %36 = arith.index_cast %35 : i32 to index
    %c0_21 = arith.constant 0 : index
    %37 = vector.load %arg2[%36, %c0_21] : memref<972x4xf32, #tpu.memory_space<vmem>>, vector<128x4xf32>
    %c1_22 = arith.constant 1 : index
    %c1_23 = arith.constant 1 : index
    %c0_24 = arith.constant 0 : index
    %c0_25 = arith.constant 0 : index
    %38 = vector.load %arg3[%c1_22, %c1_23, %c0_24, %c0_25] : memref<3x3x4x128xbf16, #tpu.memory_space<vmem>>, vector<1x1x4x128xbf16>
    %39 = vector.shape_cast %38 : vector<1x1x4x128xbf16> to vector<4x128xbf16>
    %40 = arith.truncf %37 : vector<128x4xf32> to vector<128x4xbf16>
    %cst_26 = arith.constant dense<0.000000e+00> : vector<128x128xf32>
    %41 = tpu.matmul %40, %39, %cst_26 {dimension_numbers = #tpu.dot_dimension_numbers<[1], [0], [0], [1], [0, 0, 1, 1], [], []>} : vector<128x4xbf16>, vector<4x128xbf16>, vector<128x128xf32> -> vector<128x128xf32>
    %42 = arith.addf %34, %41 : vector<128x128xf32>
    %c20_i32 = arith.constant 20 : i32
    %43 = arith.addi %1, %c20_i32 : i32
    %44 = arith.index_cast %43 : i32 to index
    %c0_27 = arith.constant 0 : index
    %45 = vector.load %arg2[%44, %c0_27] : memref<972x4xf32, #tpu.memory_space<vmem>>, vector<128x4xf32>
    %c1_28 = arith.constant 1 : index
    %c2_29 = arith.constant 2 : index
    %c0_30 = arith.constant 0 : index
    %c0_31 = arith.constant 0 : index
    %46 = vector.load %arg3[%c1_28, %c2_29, %c0_30, %c0_31] : memref<3x3x4x128xbf16, #tpu.memory_space<vmem>>, vector<1x1x4x128xbf16>
    %47 = vector.shape_cast %46 : vector<1x1x4x128xbf16> to vector<4x128xbf16>
    %48 = arith.truncf %45 : vector<128x4xf32> to vector<128x4xbf16>
    %cst_32 = arith.constant dense<0.000000e+00> : vector<128x128xf32>
    %49 = tpu.matmul %48, %47, %cst_32 {dimension_numbers = #tpu.dot_dimension_numbers<[1], [0], [0], [1], [0, 0, 1, 1], [], []>} : vector<128x4xbf16>, vector<4x128xbf16>, vector<128x128xf32> -> vector<128x128xf32>
    %50 = arith.addf %42, %49 : vector<128x128xf32>
    %c36_i32 = arith.constant 36 : i32
    %51 = arith.addi %1, %c36_i32 : i32
    %52 = arith.index_cast %51 : i32 to index
    %c0_33 = arith.constant 0 : index
    %53 = vector.load %arg2[%52, %c0_33] : memref<972x4xf32, #tpu.memory_space<vmem>>, vector<128x4xf32>
    %c2_34 = arith.constant 2 : index
    %c0_35 = arith.constant 0 : index
    %c0_36 = arith.constant 0 : index
    %c0_37 = arith.constant 0 : index
    %54 = vector.load %arg3[%c2_34, %c0_35, %c0_36, %c0_37] : memref<3x3x4x128xbf16, #tpu.memory_space<vmem>>, vector<1x1x4x128xbf16>
    %55 = vector.shape_cast %54 : vector<1x1x4x128xbf16> to vector<4x128xbf16>
    %56 = arith.truncf %53 : vector<128x4xf32> to vector<128x4xbf16>
    %cst_38 = arith.constant dense<0.000000e+00> : vector<128x128xf32>
    %57 = tpu.matmul %56, %55, %cst_38 {dimension_numbers = #tpu.dot_dimension_numbers<[1], [0], [0], [1], [0, 0, 1, 1], [], []>} : vector<128x4xbf16>, vector<4x128xbf16>, vector<128x128xf32> -> vector<128x128xf32>
    %58 = arith.addf %50, %57 : vector<128x128xf32>
    %c37_i32 = arith.constant 37 : i32
    %59 = arith.addi %1, %c37_i32 : i32
    %60 = arith.index_cast %59 : i32 to index
    %c0_39 = arith.constant 0 : index
    %61 = vector.load %arg2[%60, %c0_39] : memref<972x4xf32, #tpu.memory_space<vmem>>, vector<128x4xf32>
    %c2_40 = arith.constant 2 : index
    %c1_41 = arith.constant 1 : index
    %c0_42 = arith.constant 0 : index
    %c0_43 = arith.constant 0 : index
    %62 = vector.load %arg3[%c2_40, %c1_41, %c0_42, %c0_43] : memref<3x3x4x128xbf16, #tpu.memory_space<vmem>>, vector<1x1x4x128xbf16>
    %63 = vector.shape_cast %62 : vector<1x1x4x128xbf16> to vector<4x128xbf16>
    %64 = arith.truncf %61 : vector<128x4xf32> to vector<128x4xbf16>
    %cst_44 = arith.constant dense<0.000000e+00> : vector<128x128xf32>
    %65 = tpu.matmul %64, %63, %cst_44 {dimension_numbers = #tpu.dot_dimension_numbers<[1], [0], [0], [1], [0, 0, 1, 1], [], []>} : vector<128x4xbf16>, vector<4x128xbf16>, vector<128x128xf32> -> vector<128x128xf32>
    %66 = arith.addf %58, %65 : vector<128x128xf32>
    %c38_i32 = arith.constant 38 : i32
    %67 = arith.addi %1, %c38_i32 : i32
    %68 = arith.index_cast %67 : i32 to index
    %c0_45 = arith.constant 0 : index
    %69 = vector.load %arg2[%68, %c0_45] : memref<972x4xf32, #tpu.memory_space<vmem>>, vector<128x4xf32>
    %c2_46 = arith.constant 2 : index
    %c2_47 = arith.constant 2 : index
    %c0_48 = arith.constant 0 : index
    %c0_49 = arith.constant 0 : index
    %70 = vector.load %arg3[%c2_46, %c2_47, %c0_48, %c0_49] : memref<3x3x4x128xbf16, #tpu.memory_space<vmem>>, vector<1x1x4x128xbf16>
    %71 = vector.shape_cast %70 : vector<1x1x4x128xbf16> to vector<4x128xbf16>
    %72 = arith.truncf %69 : vector<128x4xf32> to vector<128x4xbf16>
    %cst_50 = arith.constant dense<0.000000e+00> : vector<128x128xf32>
    %73 = tpu.matmul %72, %71, %cst_50 {dimension_numbers = #tpu.dot_dimension_numbers<[1], [0], [0], [1], [0, 0, 1, 1], [], []>} : vector<128x4xbf16>, vector<4x128xbf16>, vector<128x128xf32> -> vector<128x128xf32>
    %74 = arith.addf %66, %73 : vector<128x128xf32>
    %c0_51 = arith.constant 0 : index
    %c0_52 = arith.constant 0 : index
    %75 = vector.load %arg4[%c0_51, %c0_52] : memref<1x128xf32, #tpu.memory_space<vmem>>, vector<1x128xf32>
    %76 = vector.broadcast %75 : vector<1x128xf32> to vector<128x128xf32>
    %77 = arith.addf %74, %76 : vector<128x128xf32>
    %cst_53 = arith.constant 0.000000e+00 : f32
    %78 = vector.broadcast %cst_53 : f32 to vector<128x128xf32>
    %79 = arith.maximumf %77, %78 : vector<128x128xf32>
    %c0_54 = arith.constant 0 : index
    %c0_55 = arith.constant 0 : index
    %80 = vector.load %arg5[%c0_54, %c0_55] : memref<128x128xf32, #tpu.memory_space<vmem>>, vector<128x128xf32>
    tpu.vector_store %arg5[%c0_54, %c0_55], %79 {strides = array<i32>} : memref<128x128xf32, #tpu.memory_space<vmem>>, vector<128x128xf32>,
    return
  }
  func.func @transform_0(%arg0: i32, %arg1: i32) -> (i32, i32) {
    %c0_i32 = arith.constant 0 : i32
    %c0_i32_0 = arith.constant 0 : i32
    %c0_i32_1 = arith.constant 0 : i32
    return %c0_i32, %c0_i32_0 : i32, i32
  }
  func.func @transform_1(%arg0: i32, %arg1: i32) -> (i32, i32, i32, i32) {
    %c0_i32 = arith.constant 0 : i32
    %c0_i32_0 = arith.constant 0 : i32
    %c0_i32_1 = arith.constant 0 : i32
    %c0_i32_2 = arith.constant 0 : i32
    return %c0_i32, %c0_i32_0, %c0_i32_1, %arg0 : i32, i32, i32, i32
  }
  func.func @transform_2(%arg0: i32, %arg1: i32) -> (i32, i32) {
    %c0_i32 = arith.constant 0 : i32
    %c0_i32_0 = arith.constant 0 : i32
    return %c0_i32, %arg0 : i32, i32
  }
  func.func @transform_3(%arg0: i32, %arg1: i32) -> (i32, i32) {
    %c0_i32 = arith.constant 0 : i32
    return %arg1, %arg0 : i32, i32
  }
}

</mosaic_0001>

<llo_original>
// kernel: tpu_custom_call.1
$region0: #{tpu_custom_call.1}
  #allocation0 [shape = 'u32[]', space=smem, size = 0x4, offset = 0x4, fixed_abs, tag = 'smem constant byte address 0x4 - core index']
  #allocation1 [shape = 'u32[72,128]{1,0:T(1,128)}', space=vmem, size = 0x9000, scoped, tag = 'internal scratch']
  %s0 = inlined_call_operand.vmem [shape: f32[972,4], index: 0, kind: input, shape index: {}]
  %s1 = inlined_call_operand.vmem [shape: bf16[3,3,4,128], index: 1, kind: input, shape index: {}]
  %s2 = inlined_call_operand.vmem [shape: f32[1,128], index: 2, kind: input, shape index: {}]
  %s3 = inlined_call_operand.hbm [shape: f32[768,128], index: 3, kind: output, shape index: {}]
  %s4 = sld [smem:[#allocation0]]
  $region45: #{tpu_custom_call.1} parent=0
    _
  %s6 = ssub.s32 1, %s4
  %s7 = scalar_select 0, %s6, %s4
  $region1: #{tpu_custom_call.1} parent=0
    #allocation2 [shape = 'u8[131072]{0}', space=vmem, size = 0x20000, scoped, tag = 'output window, operand 0']
    #allocation3 [shape = 's32[2]{0}', space=sflag, size = 0x8, scoped, tag = 'scoped memory for tpu_custom_call.1']
    %8 = vsyncpa [#allocation3], 0
    %s9 = scalar_lea.sflag [#allocation3], 1
    %10 = vsyncpa %s9, 0
    loop: start=0, step=1, limit=8
    $region2: #{tpu_custom_call.1} parent=1 // loop_pre_header
      _
    $region3: #{tpu_custom_call.1} parent=1 // loop_header
      %s12 = sphi 0, %s16
      %p13 = scmp.ge.s32.totalorder %s12, 8
      %s19 = sphi 0, %s31
      %s20 = sphi 0, %s27
      %s21 = sphi 0, %s19
      %s22 = sphi 0, %s20
      %s23 = sphi 0, %s21
      %s24 = sphi 0, %s22
      %s32 = sphi 0, %s32
      %s34 = sphi 0, %s32
      %s35 = sphi 0, %s34
      %s49 = sphi 0, %s35
      %s55 = sphi 0, %s57
      %s58 = sphi 0, %s55
      %s59 = sphi 0, %s58
      %s75 = sphi 0, %s59
      %s81 = sphi 0, %s83
      %s84 = sphi 0, %s81
      %s85 = sphi 0, %s84
      %s101 = sphi 0, %s85
      %s109 = sphi 0, %s111
      %s112 = sphi 0, %s109
      %s113 = sphi 0, %s112
      %s129 = sphi 0, %s113
    $region4: #{tpu_custom_call.1} parent=1 // loop_header_branch
      %15 = sbr.rel (%p13) target = $region8
    $region5: #{tpu_custom_call.1} parent=1 // loop_body
      %s17 = ssub.s32 %s12, 1
      %s18 = ssub.s32 %s12, 2
      %s25 = sadd.s32 1, %s20
      %p26 = scmp.ge.s32.totalorder %s25, 6
      %s27 = scalar_select %p26, 0, %s25
      %s28 = sadd.s32 1, %s19
      %s29 = scalar_select %p26, %s28, %s19
      %p30 = scmp.ge.s32.totalorder %s29, 1
      %s31 = scalar_select %p30, 0, %s29
      %s33 = sadd.s32 %s32, 1
      %p36 = scmp.eq.s32.totalorder %s12, 5
      %p37 = scmp.ne.s32.totalorder %s32, %s34
      %p38 = scmp.eq.s32.totalorder %s12, 0
      %p39 = por %p37, %p38
      %p40 = scmp.ne.s32.totalorder %s32, %s34
      %p41 = scmp.eq.s32.totalorder %s17, 5
      %p42 = por %p40, %p41
      %p43 = scmp.ne.s32.totalorder %s34, %s35
      %p44 = scmp.eq.s32.totalorder %s17, 0
      %p45 = por %p43, %p44
      %p46 = scmp.ne.s32.totalorder %s34, %s35
      %p47 = scmp.eq.s32.totalorder %s18, 5
      %p48 = por %p46, %p47
      %p50 = scmp.ne.s32.totalorder %s35, %s49
      %p51 = scmp.eq.s32.totalorder %s18, 0
      %p52 = por %p50, %p51
      %s53 = ssub.s32 %s19, %s31
      %p54 = scmp.eq.s32.totalorder %s53, 0
      %s56 = sadd.s32 %s55, 1
      %s57 = scalar_select %p54, %s55, %s56
      %p60 = pneg %p54
      %p61 = scmp.eq.s32.totalorder %s12, 5
      %p62 = por %p60, %p61
      %p63 = scmp.ne.s32.totalorder %s55, %s58
      %p64 = scmp.eq.s32.totalorder %s12, 0
      %p65 = por %p63, %p64
      %p66 = scmp.ne.s32.totalorder %s55, %s58
      %p67 = scmp.eq.s32.totalorder %s17, 5
      %p68 = por %p66, %p67
      %p69 = scmp.ne.s32.totalorder %s58, %s59
      %p70 = scmp.eq.s32.totalorder %s17, 0
      %p71 = por %p69, %p70
      %p72 = scmp.ne.s32.totalorder %s58, %s59
      %p73 = scmp.eq.s32.totalorder %s18, 5
      %p74 = por %p72, %p73
      %p76 = scmp.ne.s32.totalorder %s59, %s75
      %p77 = scmp.eq.s32.totalorder %s18, 0
      %p78 = por %p76, %p77
      %s79 = ssub.s32 %s19, %s31
      %p80 = scmp.eq.s32.totalorder %s79, 0
      %s82 = sadd.s32 %s81, 1
      %s83 = scalar_select %p80, %s81, %s82
      %p86 = pneg %p80
      %p87 = scmp.eq.s32.totalorder %s12, 5
      %p88 = por %p86, %p87
      %p89 = scmp.ne.s32.totalorder %s81, %s84
      %p90 = scmp.eq.s32.totalorder %s12, 0
      %p91 = por %p89, %p90
      %p92 = scmp.ne.s32.totalorder %s81, %s84
      %p93 = scmp.eq.s32.totalorder %s17, 5
      %p94 = por %p92, %p93
      %p95 = scmp.ne.s32.totalorder %s84, %s85
      %p96 = scmp.eq.s32.totalorder %s17, 0
      %p97 = por %p95, %p96
      %p98 = scmp.ne.s32.totalorder %s84, %s85
      %p99 = scmp.eq.s32.totalorder %s18, 5
      %p100 = por %p98, %p99
      %p102 = scmp.ne.s32.totalorder %s85, %s101
      %p103 = scmp.eq.s32.totalorder %s18, 0
      %p104 = por %p102, %p103
      %s105 = ssub.s32 %s20, %s27
      %s106 = ssub.s32 %s19, %s31
      %s107 = sor.u32 %s105, %s106
      %p108 = scmp.eq.s32.totalorder %s107, 0
      %s110 = sadd.s32 %s109, 1
      %s111 = scalar_select %p108, %s109, %s110
      %p114 = pneg %p108
      %p115 = scmp.eq.s32.totalorder %s12, 5
      %p116 = por %p114, %p115
      %p117 = scmp.ne.s32.totalorder %s109, %s112
      %p118 = scmp.eq.s32.totalorder %s12, 0
      %p119 = por %p117, %p118
      %p120 = scmp.ne.s32.totalorder %s109, %s112
      %p121 = scmp.eq.s32.totalorder %s17, 5
      %p122 = por %p120, %p121
      %p123 = scmp.ne.s32.totalorder %s112, %s113
      %p124 = scmp.eq.s32.totalorder %s17, 0
      %p125 = por %p123, %p124
      %p126 = scmp.ne.s32.totalorder %s112, %s113
      %p127 = scmp.eq.s32.totalorder %s18, 5
      %p128 = por %p126, %p127
      %p130 = scmp.ne.s32.totalorder %s113, %s129
      %p131 = scmp.eq.s32.totalorder %s18, 0
      %p132 = por %p130, %p131
      %p133 = scmp.le.s32.totalorder 1, %s12
      %p134 = scmp.lt.s32.totalorder %s12, 7
      %p135 = pnand %p133, %p134
      %p136 = pneg %p135
      // Predicated region
      $region9: #{tpu_custom_call.1} parent=5 // pred_check
        _
      $region10: #{tpu_custom_call.1} parent=5 // pred_check_branch
        %138 = sbr.rel (%p135) target = $region12
      $region11: #{tpu_custom_call.1} parent=5 // pred_region
        %s139 = ssub.s32 %s12, 1
        // Predicated region
        $region13: #{tpu_custom_call.1} parent=11 // pred_check
          %p140 = pneg %p45
        $region14: #{tpu_custom_call.1} parent=11 // pred_check_branch
          %142 = sbr.rel (%p140) target = $region16
        $region15: #{tpu_custom_call.1} parent=11 // pred_region
          _
        $region16: #{tpu_custom_call.1} parent=11 // pred_fallthru
          _
        // Predicated region
        $region17: #{tpu_custom_call.1} parent=11 // pred_check
          %p143 = pneg %p71
        $region18: #{tpu_custom_call.1} parent=11 // pred_check_branch
          %145 = sbr.rel (%p143) target = $region20
        $region19: #{tpu_custom_call.1} parent=11 // pred_region
          %p146 = scmp.lt.s32.totalorder %s21, 0
          %s147 = scalar_select %p146, %s21, 0
          %s148 = smul.addr %s147, 2
          %s149 = scalar_lea.vmem %s1, %s148
        $region20: #{tpu_custom_call.1} parent=11 // pred_fallthru
          _
        // Predicated region
        $region21: #{tpu_custom_call.1} parent=11 // pred_check
          %p150 = pneg %p97
        $region22: #{tpu_custom_call.1} parent=11 // pred_check_branch
          %152 = sbr.rel (%p150) target = $region24
        $region23: #{tpu_custom_call.1} parent=11 // pred_region
          %p153 = scmp.lt.s32.totalorder %s21, 0
          %s154 = scalar_select %p153, %s21, 0
          %s155 = scalar_lea.vmem %s2, %s154
        $region24: #{tpu_custom_call.1} parent=11 // pred_fallthru
          _
      $region12: #{tpu_custom_call.1} parent=5 // pred_fallthru
        _
      %p156 = scmp.lt.s32.totalorder %s12, 6
      // Predicated region
      $region25: #{tpu_custom_call.1} parent=5 // pred_check
        %p157 = pneg %p156
      $region26: #{tpu_custom_call.1} parent=5 // pred_check_branch
        %159 = sbr.rel (%p157) target = $region28
      $region27: #{tpu_custom_call.1} parent=5 // pred_region
        _
      $region28: #{tpu_custom_call.1} parent=5 // pred_fallthru
        _
      %p160 = scmp.le.s32.totalorder 1, %s12
      %p161 = scmp.lt.s32.totalorder %s12, 7
      %p162 = pnand %p160, %p161
      %p163 = pneg %p162
      // Predicated region
      $region29: #{tpu_custom_call.1} parent=5 // pred_check
        _
      $region30: #{tpu_custom_call.1} parent=5 // pred_check_branch
        %165 = sbr.rel (%p162) target = $region32
      $region31: #{tpu_custom_call.1} parent=5 // pred_region
        %s166 = ssub.s32 %s12, 1
        %p167 = pneg %p45
        %p168 = pneg %p42
        %p169 = scmp.lt.s32.totalorder %s21, 0
        %s170 = scalar_select %p169, %s21, 0
        %s171 = smul.addr %s170, 2
        %s172 = scalar_lea.vmem %s1, %s171
        %p173 = pneg %p71
        %p174 = pneg %p68
        %p175 = scmp.lt.s32.totalorder %s21, 0
        %s176 = scalar_select %p175, %s21, 0
        %s177 = scalar_lea.vmem %s2, %s176
        %p178 = pneg %p97
        %p179 = pneg %p94
        %p180 = pneg %p125
        %p181 = pneg %p122
        %s182 = sand.u32 %s112, 1
        %s183 = scalar_lea.sflag [#allocation3], %s182
        %s184 = sand.u32 %s112, 1
        %s185 = smul.addr %s184, 128
        %s186 = scalar_lea.vmem [#allocation2], %s185
        %p187 = scmp.lt.s32.totalorder %s21, 0
        %s188 = scalar_select %p187, %s21, 0
        %s189 = smul.addr %s188, 2
        %s190 = scalar_lea.vmem %s1, %s189
        %p191 = scmp.lt.s32.totalorder %s21, 0
        %s192 = scalar_select %p191, %s21, 0
        %s193 = scalar_lea.vmem %s2, %s192
        %s194 = smul.u32 16, %s22
        %s196 = smul.u32 %s22, 128
        %s197 = scalar_lea.vmem %s0, %s196
        %v198 = vld [vmem:[%s197] sm:$0xff]
        %v199 = vld [vmem:[%s197 + $0x8] sm:$0xff]
        %v200 = vld [vmem:[%s197 + $0x10] sm:$0xff]
        %v201 = vld [vmem:[%s197 + $0x18] sm:$0xff]
        %v202 = vld [vmem:[%s197 + $0x20] sm:$0xff]
        %v203 = vld [vmem:[%s197 + $0x28] sm:$0xff]
        %v204 = vld [vmem:[%s197 + $0x30] sm:$0xff]
        %v205 = vld [vmem:[%s197 + $0x38] sm:$0xff]
        %v206 = vld [vmem:[%s197 + $0x40] sm:$0xff]
        %v207 = vld [vmem:[%s197 + $0x48] sm:$0xff]
        %v208 = vld [vmem:[%s197 + $0x50] sm:$0xff]
        %v209 = vld [vmem:[%s197 + $0x58] sm:$0xff]
        %v210 = vld [vmem:[%s197 + $0x60] sm:$0xff]
        %v211 = vld [vmem:[%s197 + $0x68] sm:$0xff]
        %v212 = vld [vmem:[%s197 + $0x70] sm:$0xff]
        %v213 = vld [vmem:[%s197 + $0x78] sm:$0xff]
        %v214 = vld [vmem:[%s190] sm:$0x3]
        %v215 = vpack.c.bf16 %v199, %v198
        %v216 = vpack.c.bf16 %v201, %v200
        %v217 = vpack.c.bf16 %v203, %v202
        %v218 = vpack.c.bf16 %v205, %v204
        %v219 = vpack.c.bf16 %v207, %v206
        %v220 = vpack.c.bf16 %v209, %v208
        %v221 = vpack.c.bf16 %v211, %v210
        %v222 = vpack.c.bf16 %v213, %v212
        %s223 = sadd.s32 %s196, 1
        %s224 = scalar_lea.vmem %s0, %s223
        %v225 = vld [vmem:[%s224] sm:$0xff]
        %v226 = vld [vmem:[%s224 + $0x8] sm:$0xff]
        %v227 = vld [vmem:[%s224 + $0x10] sm:$0xff]
        %v228 = vld [vmem:[%s224 + $0x18] sm:$0xff]
        %v229 = vld [vmem:[%s224 + $0x20] sm:$0xff]
        %v230 = vld [vmem:[%s224 + $0x28] sm:$0xff]
        %v231 = vld [vmem:[%s224 + $0x30] sm:$0xff]
        %v232 = vld [vmem:[%s224 + $0x38] sm:$0xff]
        %v233 = vld [vmem:[%s224 + $0x40] sm:$0xff]
        %v234 = vld [vmem:[%s224 + $0x48] sm:$0xff]
        %v235 = vld [vmem:[%s224 + $0x50] sm:$0xff]
        %v236 = vld [vmem:[%s224 + $0x58] sm:$0xff]
        %v237 = vld [vmem:[%s224 + $0x60] sm:$0xff]
        %v238 = vld [vmem:[%s224 + $0x68] sm:$0xff]
        %v239 = vld [vmem:[%s224 + $0x70] sm:$0xff]
        %v240 = vld [vmem:[%s224 + $0x78] sm:$0xff]
        %s241 = scalar_lea.vmem %s190, 2
        %v242 = vld [vmem:[%s241] sm:$0x3]
        %v243 = vpack.c.bf16 %v226, %v225
        %v244 = vpack.c.bf16 %v228, %v227
        %v245 = vpack.c.bf16 %v230, %v229
        %v246 = vpack.c.bf16 %v232, %v231
        %v247 = vpack.c.bf16 %v234, %v233
        %v248 = vpack.c.bf16 %v236, %v235
        %v249 = vpack.c.bf16 %v238, %v237
        %v250 = vpack.c.bf16 %v240, %v239
        %vm251 = vcmask 31744
        %v253 = vsel %vm251, %v243, 0
        %v256 = vsel %vm251, %v244, 0
        %v259 = vsel %vm251, %v245, 0
        %v262 = vsel %vm251, %v246, 0
        %v265 = vsel %vm251, %v247, 0
        %v268 = vsel %vm251, %v248, 0
        %v271 = vsel %vm251, %v249, 0
        %v274 = vsel %vm251, %v250, 0
        %vm276 = vcmask 1041408
        %v278 = vsel %vm276, %v242, 0
        %280 = vmatpush.bf16.msra.mxu0 0
        %281 = vmatpush.bf16.msra.mxu0 0
        %282 = vmatpush.bf16.msra.mxu0 0
        %283 = vmatpush.bf16.msra.mxu0 0
        %284 = vmatpush.bf16.msra.mxu0 0
        %285 = vmatpush.bf16.msra.mxu0 0
        %286 = vmatpush.bf16.msra.mxu0 0
        %287 = vmatpush.bf16.msra.mxu0 %v278
        %288 = vmatmul.bf16.gmra.mxu0 %v253
        %v289 = vpop.f32.mrf.mxu0
        %v290 = vadd.f32 0.0, %v289
        %v291 = vpop.f32.mrf.mxu0
        %v292 = vadd.f32 0.0, %v291
        %293 = vmatmul.bf16.gmra.mxu0 %v256
        %v294 = vpop.f32.mrf.mxu0
        %v295 = vadd.f32 0.0, %v294
        %v296 = vpop.f32.mrf.mxu0
        %v297 = vadd.f32 0.0, %v296
        %298 = vmatmul.bf16.gmra.mxu0 %v259
        %v299 = vpop.f32.mrf.mxu0
        %v300 = vadd.f32 0.0, %v299
        %v301 = vpop.f32.mrf.mxu0
        %v302 = vadd.f32 0.0, %v301
        %303 = vmatmul.bf16.gmra.mxu0 %v262
        %v304 = vpop.f32.mrf.mxu0
        %v305 = vadd.f32 0.0, %v304
        %v306 = vpop.f32.mrf.mxu0
        %v307 = vadd.f32 0.0, %v306
        %308 = vmatmul.bf16.gmra.mxu0 %v265
        %v309 = vpop.f32.mrf.mxu0
        %v310 = vadd.f32 0.0, %v309
        %v311 = vpop.f32.mrf.mxu0
        %v312 = vadd.f32 0.0, %v311
        %313 = vmatmul.bf16.gmra.mxu0 %v268
        %v314 = vpop.f32.mrf.mxu0
        %v315 = vadd.f32 0.0, %v314
        %v316 = vpop.f32.mrf.mxu0
        %v317 = vadd.f32 0.0, %v316
        %318 = vmatmul.bf16.gmra.mxu0 %v271
        %v319 = vpop.f32.mrf.mxu0
        %v320 = vadd.f32 0.0, %v319
        %v321 = vpop.f32.mrf.mxu0
        %v322 = vadd.f32 0.0, %v321
        %323 = vmatmul.bf16.gmra.mxu0 %v274
        %v324 = vpop.f32.mrf.mxu0
        %v325 = vadd.f32 0.0, %v324
        %v326 = vpop.f32.mrf.mxu0
        %v327 = vadd.f32 0.0, %v326
        %328 = vdwg.mxu0
        %v330 = vsel %vm251, %v215, 0
        %v333 = vsel %vm251, %v216, 0
        %v336 = vsel %vm251, %v217, 0
        %v339 = vsel %vm251, %v218, 0
        %v342 = vsel %vm251, %v219, 0
        %v345 = vsel %vm251, %v220, 0
        %v348 = vsel %vm251, %v221, 0
        %v351 = vsel %vm251, %v222, 0
        %v354 = vsel %vm276, %v214, 0
        %356 = vmatpush.bf16.msra.mxu0 0
        %357 = vmatpush.bf16.msra.mxu0 0
        %358 = vmatpush.bf16.msra.mxu0 0
        %359 = vmatpush.bf16.msra.mxu0 0
        %360 = vmatpush.bf16.msra.mxu0 0
        %361 = vmatpush.bf16.msra.mxu0 0
        %362 = vmatpush.bf16.msra.mxu0 0
        %363 = vmatpush.bf16.msra.mxu0 %v354
        %364 = vmatmul.bf16.gmra.mxu0 %v330
        %v365 = vpop.f32.mrf.mxu0
        %v366 = vadd.f32 %v290, %v365
        %v367 = vpop.f32.mrf.mxu0
        %v368 = vadd.f32 %v292, %v367
        %369 = vmatmul.bf16.gmra.mxu0 %v333
        %v370 = vpop.f32.mrf.mxu0
        %v371 = vadd.f32 %v295, %v370
        %v372 = vpop.f32.mrf.mxu0
        %v373 = vadd.f32 %v297, %v372
        %374 = vmatmul.bf16.gmra.mxu0 %v336
        %v375 = vpop.f32.mrf.mxu0
        %v376 = vadd.f32 %v300, %v375
        %v377 = vpop.f32.mrf.mxu0
        %v378 = vadd.f32 %v302, %v377
        %379 = vmatmul.bf16.gmra.mxu0 %v339
        %v380 = vpop.f32.mrf.mxu0
        %v381 = vadd.f32 %v305, %v380
        %v382 = vpop.f32.mrf.mxu0
        %v383 = vadd.f32 %v307, %v382
        %384 = vmatmul.bf16.gmra.mxu0 %v342
        %v385 = vpop.f32.mrf.mxu0
        %v386 = vadd.f32 %v310, %v385
        %v387 = vpop.f32.mrf.mxu0
        %v388 = vadd.f32 %v312, %v387
        %389 = vmatmul.bf16.gmra.mxu0 %v345
        %v390 = vpop.f32.mrf.mxu0
        %v391 = vadd.f32 %v315, %v390
        %v392 = vpop.f32.mrf.mxu0
        %v393 = vadd.f32 %v317, %v392
        %394 = vmatmul.bf16.gmra.mxu0 %v348
        %v395 = vpop.f32.mrf.mxu0
        %v396 = vadd.f32 %v320, %v395
        %v397 = vpop.f32.mrf.mxu0
        %v398 = vadd.f32 %v322, %v397
        %399 = vmatmul.bf16.gmra.mxu0 %v351
        %v400 = vpop.f32.mrf.mxu0
        %v401 = vadd.f32 %v325, %v400
        %v402 = vpop.f32.mrf.mxu0
        %v403 = vadd.f32 %v327, %v402
        %404 = vdwg.mxu0
        %s405 = sadd.s32 %s196, 2
        %s406 = scalar_lea.vmem %s0, %s405
        %v407 = vld [vmem:[%s406] sm:$0xff]
        %v408 = vld [vmem:[%s406 + $0x8] sm:$0xff]
        %v409 = vld [vmem:[%s406 + $0x10] sm:$0xff]
        %v410 = vld [vmem:[%s406 + $0x18] sm:$0xff]
        %v411 = vld [vmem:[%s406 + $0x20] sm:$0xff]
        %v412 = vld [vmem:[%s406 + $0x28] sm:$0xff]
        %v413 = vld [vmem:[%s406 + $0x30] sm:$0xff]
        %v414 = vld [vmem:[%s406 + $0x38] sm:$0xff]
        %v415 = vld [vmem:[%s406 + $0x40] sm:$0xff]
        %v416 = vld [vmem:[%s406 + $0x48] sm:$0xff]
        %v417 = vld [vmem:[%s406 + $0x50] sm:$0xff]
        %v418 = vld [vmem:[%s406 + $0x58] sm:$0xff]
        %v419 = vld [vmem:[%s406 + $0x60] sm:$0xff]
        %v420 = vld [vmem:[%s406 + $0x68] sm:$0xff]
        %v421 = vld [vmem:[%s406 + $0x70] sm:$0xff]
        %v422 = vld [vmem:[%s406 + $0x78] sm:$0xff]
        %s423 = scalar_lea.vmem %s190, 4
        %v424 = vld [vmem:[%s423] sm:$0x3]
        %v425 = vpack.c.bf16 %v408, %v407
        %v426 = vpack.c.bf16 %v410, %v409
        %v427 = vpack.c.bf16 %v412, %v411
        %v428 = vpack.c.bf16 %v414, %v413
        %v429 = vpack.c.bf16 %v416, %v415
        %v430 = vpack.c.bf16 %v418, %v417
        %v431 = vpack.c.bf16 %v420, %v419
        %v432 = vpack.c.bf16 %v422, %v421
        %v434 = vsel %vm251, %v425, 0
        %v437 = vsel %vm251, %v426, 0
        %v440 = vsel %vm251, %v427, 0
        %v443 = vsel %vm251, %v428, 0
        %v446 = vsel %vm251, %v429, 0
        %v449 = vsel %vm251, %v430, 0
        %v452 = vsel %vm251, %v431, 0
        %v455 = vsel %vm251, %v432, 0
        %v458 = vsel %vm276, %v424, 0
        %460 = vmatpush.bf16.msra.mxu0 0
        %461 = vmatpush.bf16.msra.mxu0 0
        %462 = vmatpush.bf16.msra.mxu0 0
        %463 = vmatpush.bf16.msra.mxu0 0
        %464 = vmatpush.bf16.msra.mxu0 0
        %465 = vmatpush.bf16.msra.mxu0 0
        %466 = vmatpush.bf16.msra.mxu0 0
        %467 = vmatpush.bf16.msra.mxu0 %v458
        %468 = vmatmul.bf16.gmra.mxu0 %v434
        %v469 = vpop.f32.mrf.mxu0
        %v470 = vadd.f32 0.0, %v469
        %v471 = vpop.f32.mrf.mxu0
        %v472 = vadd.f32 0.0, %v471
        %473 = vmatmul.bf16.gmra.mxu0 %v437
        %v474 = vpop.f32.mrf.mxu0
        %v475 = vadd.f32 0.0, %v474
        %v476 = vpop.f32.mrf.mxu0
        %v477 = vadd.f32 0.0, %v476
        %478 = vmatmul.bf16.gmra.mxu0 %v440
        %v479 = vpop.f32.mrf.mxu0
        %v480 = vadd.f32 0.0, %v479
        %v481 = vpop.f32.mrf.mxu0
        %v482 = vadd.f32 0.0, %v481
        %483 = vmatmul.bf16.gmra.mxu0 %v443
        %v484 = vpop.f32.mrf.mxu0
        %v485 = vadd.f32 0.0, %v484
        %v486 = vpop.f32.mrf.mxu0
        %v487 = vadd.f32 0.0, %v486
        %488 = vmatmul.bf16.gmra.mxu0 %v446
        %v489 = vpop.f32.mrf.mxu0
        %v490 = vadd.f32 0.0, %v489
        %v491 = vpop.f32.mrf.mxu0
        %v492 = vadd.f32 0.0, %v491
        %493 = vmatmul.bf16.gmra.mxu0 %v449
        %v494 = vpop.f32.mrf.mxu0
        %v495 = vadd.f32 0.0, %v494
        %v496 = vpop.f32.mrf.mxu0
        %v497 = vadd.f32 0.0, %v496
        %498 = vmatmul.bf16.gmra.mxu0 %v452
        %v499 = vpop.f32.mrf.mxu0
        %v500 = vadd.f32 0.0, %v499
        %v501 = vpop.f32.mrf.mxu0
        %v502 = vadd.f32 0.0, %v501
        %503 = vmatmul.bf16.gmra.mxu0 %v455
        %v504 = vpop.f32.mrf.mxu0
        %v505 = vadd.f32 0.0, %v504
        %v506 = vpop.f32.mrf.mxu0
        %v507 = vadd.f32 0.0, %v506
        %508 = vdwg.mxu0
        %v509 = vadd.f32 %v366, %v470
        %v510 = vadd.f32 %v368, %v472
        %v511 = vadd.f32 %v371, %v475
        %v512 = vadd.f32 %v373, %v477
        %v513 = vadd.f32 %v376, %v480
        %v514 = vadd.f32 %v378, %v482
        %v515 = vadd.f32 %v381, %v485
        %v516 = vadd.f32 %v383, %v487
        %v517 = vadd.f32 %v386, %v490
        %v518 = vadd.f32 %v388, %v492
        %v519 = vadd.f32 %v391, %v495
        %v520 = vadd.f32 %v393, %v497
        %v521 = vadd.f32 %v396, %v500
        %v522 = vadd.f32 %v398, %v502
        %v523 = vadd.f32 %v401, %v505
        %v524 = vadd.f32 %v403, %v507
        %s525 = sadd.s32 %s196, 18
        %s526 = scalar_lea.vmem %s0, %s525
        %v527 = vld [vmem:[%s526] sm:$0xff]
        %v528 = vld [vmem:[%s526 + $0x8] sm:$0xff]
        %v529 = vld [vmem:[%s526 + $0x10] sm:$0xff]
        %v530 = vld [vmem:[%s526 + $0x18] sm:$0xff]
        %v531 = vld [vmem:[%s526 + $0x20] sm:$0xff]
        %v532 = vld [vmem:[%s526 + $0x28] sm:$0xff]
        %v533 = vld [vmem:[%s526 + $0x30] sm:$0xff]
        %v534 = vld [vmem:[%s526 + $0x38] sm:$0xff]
        %v535 = vld [vmem:[%s526 + $0x40] sm:$0xff]
        %v536 = vld [vmem:[%s526 + $0x48] sm:$0xff]
        %v537 = vld [vmem:[%s526 + $0x50] sm:$0xff]
        %v538 = vld [vmem:[%s526 + $0x58] sm:$0xff]
        %v539 = vld [vmem:[%s526 + $0x60] sm:$0xff]
        %v540 = vld [vmem:[%s526 + $0x68] sm:$0xff]
        %v541 = vld [vmem:[%s526 + $0x70] sm:$0xff]
        %v542 = vld [vmem:[%s526 + $0x78] sm:$0xff]
        %s543 = scalar_lea.vmem %s190, 6
        %v544 = vld [vmem:[%s543] sm:$0x3]
        %v545 = vpack.c.bf16 %v528, %v527
        %v546 = vpack.c.bf16 %v530, %v529
        %v547 = vpack.c.bf16 %v532, %v531
        %v548 = vpack.c.bf16 %v534, %v533
        %v549 = vpack.c.bf16 %v536, %v535
        %v550 = vpack.c.bf16 %v538, %v537
        %v551 = vpack.c.bf16 %v540, %v539
        %v552 = vpack.c.bf16 %v542, %v541
        %v554 = vsel %vm251, %v545, 0
        %v557 = vsel %vm251, %v546, 0
        %v560 = vsel %vm251, %v547, 0
        %v563 = vsel %vm251, %v548, 0
        %v566 = vsel %vm251, %v549, 0
        %v569 = vsel %vm251, %v550, 0
        %v572 = vsel %vm251, %v551, 0
        %v575 = vsel %vm251, %v552, 0
        %v578 = vsel %vm276, %v544, 0
        %580 = vmatpush.bf16.msra.mxu0 0
        %581 = vmatpush.bf16.msra.mxu0 0
        %582 = vmatpush.bf16.msra.mxu0 0
        %583 = vmatpush.bf16.msra.mxu0 0
        %584 = vmatpush.bf16.msra.mxu0 0
        %585 = vmatpush.bf16.msra.mxu0 0
        %586 = vmatpush.bf16.msra.mxu0 0
        %587 = vmatpush.bf16.msra.mxu0 %v578
        %588 = vmatmul.bf16.gmra.mxu0 %v554
        %v589 = vpop.f32.mrf.mxu0
        %v590 = vadd.f32 0.0, %v589
        %v591 = vpop.f32.mrf.mxu0
        %v592 = vadd.f32 0.0, %v591
        %593 = vmatmul.bf16.gmra.mxu0 %v557
        %v594 = vpop.f32.mrf.mxu0
        %v595 = vadd.f32 0.0, %v594
        %v596 = vpop.f32.mrf.mxu0
        %v597 = vadd.f32 0.0, %v596
        %598 = vmatmul.bf16.gmra.mxu0 %v560
        %v599 = vpop.f32.mrf.mxu0
        %v600 = vadd.f32 0.0, %v599
        %v601 = vpop.f32.mrf.mxu0
        %v602 = vadd.f32 0.0, %v601
        %603 = vmatmul.bf16.gmra.mxu0 %v563
        %v604 = vpop.f32.mrf.mxu0
        %v605 = vadd.f32 0.0, %v604
        %v606 = vpop.f32.mrf.mxu0
        %v607 = vadd.f32 0.0, %v606
        %608 = vmatmul.bf16.gmra.mxu0 %v566
        %v609 = vpop.f32.mrf.mxu0
        %v610 = vadd.f32 0.0, %v609
        %v611 = vpop.f32.mrf.mxu0
        %v612 = vadd.f32 0.0, %v611
        %613 = vmatmul.bf16.gmra.mxu0 %v569
        %v614 = vpop.f32.mrf.mxu0
        %v615 = vadd.f32 0.0, %v614
        %v616 = vpop.f32.mrf.mxu0
        %v617 = vadd.f32 0.0, %v616
        %618 = vmatmul.bf16.gmra.mxu0 %v572
        %v619 = vpop.f32.mrf.mxu0
        %v620 = vadd.f32 0.0, %v619
        %v621 = vpop.f32.mrf.mxu0
        %v622 = vadd.f32 0.0, %v621
        %623 = vmatmul.bf16.gmra.mxu0 %v575
        %v624 = vpop.f32.mrf.mxu0
        %v625 = vadd.f32 0.0, %v624
        %v626 = vpop.f32.mrf.mxu0
        %v627 = vadd.f32 0.0, %v626
        %628 = vdwg.mxu0
        %v629 = vadd.f32 %v509, %v590
        %v630 = vadd.f32 %v510, %v592
        %v631 = vadd.f32 %v511, %v595
        %v632 = vadd.f32 %v512, %v597
        %v633 = vadd.f32 %v513, %v600
        %v634 = vadd.f32 %v514, %v602
        %v635 = vadd.f32 %v515, %v605
        %v636 = vadd.f32 %v516, %v607
        %v637 = vadd.f32 %v517, %v610
        %v638 = vadd.f32 %v518, %v612
        %v639 = vadd.f32 %v519, %v615
        %v640 = vadd.f32 %v520, %v617
        %v641 = vadd.f32 %v521, %v620
        %v642 = vadd.f32 %v522, %v622
        %v643 = vadd.f32 %v523, %v625
        %v644 = vadd.f32 %v524, %v627
        %s645 = sadd.s32 %s196, 19
        %s646 = scalar_lea.vmem %s0, %s645
        %v647 = vld [vmem:[%s646] sm:$0xff]
        %v648 = vld [vmem:[%s646 + $0x8] sm:$0xff]
        %v649 = vld [vmem:[%s646 + $0x10] sm:$0xff]
        %v650 = vld [vmem:[%s646 + $0x18] sm:$0xff]
        %v651 = vld [vmem:[%s646 + $0x20] sm:$0xff]
        %v652 = vld [vmem:[%s646 + $0x28] sm:$0xff]
        %v653 = vld [vmem:[%s646 + $0x30] sm:$0xff]
        %v654 = vld [vmem:[%s646 + $0x38] sm:$0xff]
        %v655 = vld [vmem:[%s646 + $0x40] sm:$0xff]
        %v656 = vld [vmem:[%s646 + $0x48] sm:$0xff]
        %v657 = vld [vmem:[%s646 + $0x50] sm:$0xff]
        %v658 = vld [vmem:[%s646 + $0x58] sm:$0xff]
        %v659 = vld [vmem:[%s646 + $0x60] sm:$0xff]
        %v660 = vld [vmem:[%s646 + $0x68] sm:$0xff]
        %v661 = vld [vmem:[%s646 + $0x70] sm:$0xff]
        %v662 = vld [vmem:[%s646 + $0x78] sm:$0xff]
        %s663 = scalar_lea.vmem %s190, 8
        %v664 = vld [vmem:[%s663] sm:$0x3]
        %v665 = vpack.c.bf16 %v648, %v647
        %v666 = vpack.c.bf16 %v650, %v649
        %v667 = vpack.c.bf16 %v652, %v651
        %v668 = vpack.c.bf16 %v654, %v653
        %v669 = vpack.c.bf16 %v656, %v655
        %v670 = vpack.c.bf16 %v658, %v657
        %v671 = vpack.c.bf16 %v660, %v659
        %v672 = vpack.c.bf16 %v662, %v661
        %v674 = vsel %vm251, %v665, 0
        %v677 = vsel %vm251, %v666, 0
        %v680 = vsel %vm251, %v667, 0
        %v683 = vsel %vm251, %v668, 0
        %v686 = vsel %vm251, %v669, 0
        %v689 = vsel %vm251, %v670, 0
        %v692 = vsel %vm251, %v671, 0
        %v695 = vsel %vm251, %v672, 0
        %v698 = vsel %vm276, %v664, 0
        %700 = vmatpush.bf16.msra.mxu0 0
        %701 = vmatpush.bf16.msra.mxu0 0
        %702 = vmatpush.bf16.msra.mxu0 0
        %703 = vmatpush.bf16.msra.mxu0 0
        %704 = vmatpush.bf16.msra.mxu0 0
        %705 = vmatpush.bf16.msra.mxu0 0
        %706 = vmatpush.bf16.msra.mxu0 0
        %707 = vmatpush.bf16.msra.mxu0 %v698
        %708 = vmatmul.bf16.gmra.mxu0 %v674
        %v709 = vpop.f32.mrf.mxu0
        %v710 = vadd.f32 0.0, %v709
        %v711 = vpop.f32.mrf.mxu0
        %v712 = vadd.f32 0.0, %v711
        %713 = vmatmul.bf16.gmra.mxu0 %v677
        %v714 = vpop.f32.mrf.mxu0
        %v715 = vadd.f32 0.0, %v714
        %v716 = vpop.f32.mrf.mxu0
        %v717 = vadd.f32 0.0, %v716
        %718 = vmatmul.bf16.gmra.mxu0 %v680
        %v719 = vpop.f32.mrf.mxu0
        %v720 = vadd.f32 0.0, %v719
        %v721 = vpop.f32.mrf.mxu0
        %v722 = vadd.f32 0.0, %v721
        %723 = vmatmul.bf16.gmra.mxu0 %v683
        %v724 = vpop.f32.mrf.mxu0
        %v725 = vadd.f32 0.0, %v724
        %v726 = vpop.f32.mrf.mxu0
        %v727 = vadd.f32 0.0, %v726
        %728 = vmatmul.bf16.gmra.mxu0 %v686
        %v729 = vpop.f32.mrf.mxu0
        %v730 = vadd.f32 0.0, %v729
        %v731 = vpop.f32.mrf.mxu0
        %v732 = vadd.f32 0.0, %v731
        %733 = vmatmul.bf16.gmra.mxu0 %v689
        %v734 = vpop.f32.mrf.mxu0
        %v735 = vadd.f32 0.0, %v734
        %v736 = vpop.f32.mrf.mxu0
        %v737 = vadd.f32 0.0, %v736
        %738 = vmatmul.bf16.gmra.mxu0 %v692
        %v739 = vpop.f32.mrf.mxu0
        %v740 = vadd.f32 0.0, %v739
        %v741 = vpop.f32.mrf.mxu0
        %v742 = vadd.f32 0.0, %v741
        %743 = vmatmul.bf16.gmra.mxu0 %v695
        %v744 = vpop.f32.mrf.mxu0
        %v745 = vadd.f32 0.0, %v744
        %v746 = vpop.f32.mrf.mxu0
        %v747 = vadd.f32 0.0, %v746
        %748 = vdwg.mxu0
        %v749 = vadd.f32 %v629, %v710
        %v750 = vadd.f32 %v630, %v712
        %v751 = vadd.f32 %v631, %v715
        %v752 = vadd.f32 %v632, %v717
        %v753 = vadd.f32 %v633, %v720
        %v754 = vadd.f32 %v634, %v722
        %v755 = vadd.f32 %v635, %v725
        %v756 = vadd.f32 %v636, %v727
        %v757 = vadd.f32 %v637, %v730
        %v758 = vadd.f32 %v638, %v732
        %v759 = vadd.f32 %v639, %v735
        %v760 = vadd.f32 %v640, %v737
        %v761 = vadd.f32 %v641, %v740
        %v762 = vadd.f32 %v642, %v742
        %v763 = vadd.f32 %v643, %v745
        %v764 = vadd.f32 %v644, %v747
        %s765 = sadd.s32 %s196, 20
        %s766 = scalar_lea.vmem %s0, %s765
        %v767 = vld [vmem:[%s766] sm:$0xff]
        %v768 = vld [vmem:[%s766 + $0x8] sm:$0xff]
        %v769 = vld [vmem:[%s766 + $0x10] sm:$0xff]
        %v770 = vld [vmem:[%s766 + $0x18] sm:$0xff]
        %v771 = vld [vmem:[%s766 + $0x20] sm:$0xff]
        %v772 = vld [vmem:[%s766 + $0x28] sm:$0xff]
        %v773 = vld [vmem:[%s766 + $0x30] sm:$0xff]
        %v774 = vld [vmem:[%s766 + $0x38] sm:$0xff]
        %v775 = vld [vmem:[%s766 + $0x40] sm:$0xff]
        %v776 = vld [vmem:[%s766 + $0x48] sm:$0xff]
        %v777 = vld [vmem:[%s766 + $0x50] sm:$0xff]
        %v778 = vld [vmem:[%s766 + $0x58] sm:$0xff]
        %v779 = vld [vmem:[%s766 + $0x60] sm:$0xff]
        %v780 = vld [vmem:[%s766 + $0x68] sm:$0xff]
        %v781 = vld [vmem:[%s766 + $0x70] sm:$0xff]
        %v782 = vld [vmem:[%s766 + $0x78] sm:$0xff]
        %s783 = scalar_lea.vmem %s190, 10
        %v784 = vld [vmem:[%s783] sm:$0x3]
        %v785 = vpack.c.bf16 %v768, %v767
        %v786 = vpack.c.bf16 %v770, %v769
        %v787 = vpack.c.bf16 %v772, %v771
        %v788 = vpack.c.bf16 %v774, %v773
        %v789 = vpack.c.bf16 %v776, %v775
        %v790 = vpack.c.bf16 %v778, %v777
        %v791 = vpack.c.bf16 %v780, %v779
        %v792 = vpack.c.bf16 %v782, %v781
        %v794 = vsel %vm251, %v785, 0
        %v797 = vsel %vm251, %v786, 0
        %v800 = vsel %vm251, %v787, 0
        %v803 = vsel %vm251, %v788, 0
        %v806 = vsel %vm251, %v789, 0
        %v809 = vsel %vm251, %v790, 0
        %v812 = vsel %vm251, %v791, 0
        %v815 = vsel %vm251, %v792, 0
        %v818 = vsel %vm276, %v784, 0
        %820 = vmatpush.bf16.msra.mxu0 0
        %821 = vmatpush.bf16.msra.mxu0 0
        %822 = vmatpush.bf16.msra.mxu0 0
        %823 = vmatpush.bf16.msra.mxu0 0
        %824 = vmatpush.bf16.msra.mxu0 0
        %825 = vmatpush.bf16.msra.mxu0 0
        %826 = vmatpush.bf16.msra.mxu0 0
        %827 = vmatpush.bf16.msra.mxu0 %v818
        %828 = vmatmul.bf16.gmra.mxu0 %v794
        %v829 = vpop.f32.mrf.mxu0
        %v830 = vadd.f32 0.0, %v829
        %v831 = vpop.f32.mrf.mxu0
        %v832 = vadd.f32 0.0, %v831
        %833 = vmatmul.bf16.gmra.mxu0 %v797
        %v834 = vpop.f32.mrf.mxu0
        %v835 = vadd.f32 0.0, %v834
        %v836 = vpop.f32.mrf.mxu0
        %v837 = vadd.f32 0.0, %v836
        %838 = vmatmul.bf16.gmra.mxu0 %v800
        %v839 = vpop.f32.mrf.mxu0
        %v840 = vadd.f32 0.0, %v839
        %v841 = vpop.f32.mrf.mxu0
        %v842 = vadd.f32 0.0, %v841
        %843 = vmatmul.bf16.gmra.mxu0 %v803
        %v844 = vpop.f32.mrf.mxu0
        %v845 = vadd.f32 0.0, %v844
        %v846 = vpop.f32.mrf.mxu0
        %v847 = vadd.f32 0.0, %v846
        %848 = vmatmul.bf16.gmra.mxu0 %v806
        %v849 = vpop.f32.mrf.mxu0
        %v850 = vadd.f32 0.0, %v849
        %v851 = vpop.f32.mrf.mxu0
        %v852 = vadd.f32 0.0, %v851
        %853 = vmatmul.bf16.gmra.mxu0 %v809
        %v854 = vpop.f32.mrf.mxu0
        %v855 = vadd.f32 0.0, %v854
        %v856 = vpop.f32.mrf.mxu0
        %v857 = vadd.f32 0.0, %v856
        %858 = vmatmul.bf16.gmra.mxu0 %v812
        %v859 = vpop.f32.mrf.mxu0
        %v860 = vadd.f32 0.0, %v859
        %v861 = vpop.f32.mrf.mxu0
        %v862 = vadd.f32 0.0, %v861
        %863 = vmatmul.bf16.gmra.mxu0 %v815
        %v864 = vpop.f32.mrf.mxu0
        %v865 = vadd.f32 0.0, %v864
        %v866 = vpop.f32.mrf.mxu0
        %v867 = vadd.f32 0.0, %v866
        %868 = vdwg.mxu0
        %v869 = vadd.f32 %v749, %v830
        %v870 = vadd.f32 %v750, %v832
        %v871 = vadd.f32 %v751, %v835
        %v872 = vadd.f32 %v752, %v837
        %v873 = vadd.f32 %v753, %v840
        %v874 = vadd.f32 %v754, %v842
        %v875 = vadd.f32 %v755, %v845
        %v876 = vadd.f32 %v756, %v847
        %v877 = vadd.f32 %v757, %v850
        %v878 = vadd.f32 %v758, %v852
        %v879 = vadd.f32 %v759, %v855
        %v880 = vadd.f32 %v760, %v857
        %v881 = vadd.f32 %v761, %v860
        %v882 = vadd.f32 %v762, %v862
        %v883 = vadd.f32 %v763, %v865
        %v884 = vadd.f32 %v764, %v867
        %s885 = sadd.s32 %s196, 36
        %s886 = scalar_lea.vmem %s0, %s885
        %v887 = vld [vmem:[%s886] sm:$0xff]
        %v888 = vld [vmem:[%s886 + $0x8] sm:$0xff]
        %v889 = vld [vmem:[%s886 + $0x10] sm:$0xff]
        %v890 = vld [vmem:[%s886 + $0x18] sm:$0xff]
        %v891 = vld [vmem:[%s886 + $0x20] sm:$0xff]
        %v892 = vld [vmem:[%s886 + $0x28] sm:$0xff]
        %v893 = vld [vmem:[%s886 + $0x30] sm:$0xff]
        %v894 = vld [vmem:[%s886 + $0x38] sm:$0xff]
        %v895 = vld [vmem:[%s886 + $0x40] sm:$0xff]
        %v896 = vld [vmem:[%s886 + $0x48] sm:$0xff]
        %v897 = vld [vmem:[%s886 + $0x50] sm:$0xff]
        %v898 = vld [vmem:[%s886 + $0x58] sm:$0xff]
        %v899 = vld [vmem:[%s886 + $0x60] sm:$0xff]
        %v900 = vld [vmem:[%s886 + $0x68] sm:$0xff]
        %v901 = vld [vmem:[%s886 + $0x70] sm:$0xff]
        %v902 = vld [vmem:[%s886 + $0x78] sm:$0xff]
        %s903 = scalar_lea.vmem %s190, 12
        %v904 = vld [vmem:[%s903] sm:$0x3]
        %v905 = vpack.c.bf16 %v888, %v887
        %v906 = vpack.c.bf16 %v890, %v889
        %v907 = vpack.c.bf16 %v892, %v891
        %v908 = vpack.c.bf16 %v894, %v893
        %v909 = vpack.c.bf16 %v896, %v895
        %v910 = vpack.c.bf16 %v898, %v897
        %v911 = vpack.c.bf16 %v900, %v899
        %v912 = vpack.c.bf16 %v902, %v901
        %v914 = vsel %vm251, %v905, 0
        %v917 = vsel %vm251, %v906, 0
        %v920 = vsel %vm251, %v907, 0
        %v923 = vsel %vm251, %v908, 0
        %v926 = vsel %vm251, %v909, 0
        %v929 = vsel %vm251, %v910, 0
        %v932 = vsel %vm251, %v911, 0
        %v935 = vsel %vm251, %v912, 0
        %v938 = vsel %vm276, %v904, 0
        %940 = vmatpush.bf16.msra.mxu0 0
        %941 = vmatpush.bf16.msra.mxu0 0
        %942 = vmatpush.bf16.msra.mxu0 0
        %943 = vmatpush.bf16.msra.mxu0 0
        %944 = vmatpush.bf16.msra.mxu0 0
        %945 = vmatpush.bf16.msra.mxu0 0
        %946 = vmatpush.bf16.msra.mxu0 0
        %947 = vmatpush.bf16.msra.mxu0 %v938
        %948 = vmatmul.bf16.gmra.mxu0 %v914
        %v949 = vpop.f32.mrf.mxu0
        %v950 = vadd.f32 0.0, %v949
        %v951 = vpop.f32.mrf.mxu0
        %v952 = vadd.f32 0.0, %v951
        %953 = vmatmul.bf16.gmra.mxu0 %v917
        %v954 = vpop.f32.mrf.mxu0
        %v955 = vadd.f32 0.0, %v954
        %v956 = vpop.f32.mrf.mxu0
        %v957 = vadd.f32 0.0, %v956
        %958 = vmatmul.bf16.gmra.mxu0 %v920
        %v959 = vpop.f32.mrf.mxu0
        %v960 = vadd.f32 0.0, %v959
        %v961 = vpop.f32.mrf.mxu0
        %v962 = vadd.f32 0.0, %v961
        %963 = vmatmul.bf16.gmra.mxu0 %v923
        %v964 = vpop.f32.mrf.mxu0
        %v965 = vadd.f32 0.0, %v964
        %v966 = vpop.f32.mrf.mxu0
        %v967 = vadd.f32 0.0, %v966
        %968 = vmatmul.bf16.gmra.mxu0 %v926
        %v969 = vpop.f32.mrf.mxu0
        %v970 = vadd.f32 0.0, %v969
        %v971 = vpop.f32.mrf.mxu0
        %v972 = vadd.f32 0.0, %v971
        %973 = vmatmul.bf16.gmra.mxu0 %v929
        %v974 = vpop.f32.mrf.mxu0
        %v975 = vadd.f32 0.0, %v974
        %v976 = vpop.f32.mrf.mxu0
        %v977 = vadd.f32 0.0, %v976
        %978 = vmatmul.bf16.gmra.mxu0 %v932
        %v979 = vpop.f32.mrf.mxu0
        %v980 = vadd.f32 0.0, %v979
        %v981 = vpop.f32.mrf.mxu0
        %v982 = vadd.f32 0.0, %v981
        %983 = vmatmul.bf16.gmra.mxu0 %v935
        %v984 = vpop.f32.mrf.mxu0
        %v985 = vadd.f32 0.0, %v984
        %v986 = vpop.f32.mrf.mxu0
        %v987 = vadd.f32 0.0, %v986
        %988 = vdwg.mxu0
        %v989 = vadd.f32 %v869, %v950
        %v990 = vadd.f32 %v870, %v952
        %v991 = vadd.f32 %v871, %v955
        %v992 = vadd.f32 %v872, %v957
        %v993 = vadd.f32 %v873, %v960
        %v994 = vadd.f32 %v874, %v962
        %v995 = vadd.f32 %v875, %v965
        %v996 = vadd.f32 %v876, %v967
        %v997 = vadd.f32 %v877, %v970
        %v998 = vadd.f32 %v878, %v972
        %v999 = vadd.f32 %v879, %v975
        %v1000 = vadd.f32 %v880, %v977
        %v1001 = vadd.f32 %v881, %v980
        %v1002 = vadd.f32 %v882, %v982
        %v1003 = vadd.f32 %v883, %v985
        %v1004 = vadd.f32 %v884, %v987
        %s1005 = sadd.s32 %s196, 37
        %s1006 = scalar_lea.vmem %s0, %s1005
        %v1007 = vld [vmem:[%s1006] sm:$0xff]
        %v1008 = vld [vmem:[%s1006 + $0x8] sm:$0xff]
        %v1009 = vld [vmem:[%s1006 + $0x10] sm:$0xff]
        %v1010 = vld [vmem:[%s1006 + $0x18] sm:$0xff]
        %v1011 = vld [vmem:[%s1006 + $0x20] sm:$0xff]
        %v1012 = vld [vmem:[%s1006 + $0x28] sm:$0xff]
        %v1013 = vld [vmem:[%s1006 + $0x30] sm:$0xff]
        %v1014 = vld [vmem:[%s1006 + $0x38] sm:$0xff]
        %v1015 = vld [vmem:[%s1006 + $0x40] sm:$0xff]
        %v1016 = vld [vmem:[%s1006 + $0x48] sm:$0xff]
        %v1017 = vld [vmem:[%s1006 + $0x50] sm:$0xff]
        %v1018 = vld [vmem:[%s1006 + $0x58] sm:$0xff]
        %v1019 = vld [vmem:[%s1006 + $0x60] sm:$0xff]
        %v1020 = vld [vmem:[%s1006 + $0x68] sm:$0xff]
        %v1021 = vld [vmem:[%s1006 + $0x70] sm:$0xff]
        %v1022 = vld [vmem:[%s1006 + $0x78] sm:$0xff]
        %s1023 = scalar_lea.vmem %s190, 14
        %v1024 = vld [vmem:[%s1023] sm:$0x3]
        %v1025 = vpack.c.bf16 %v1008, %v1007
        %v1026 = vpack.c.bf16 %v1010, %v1009
        %v1027 = vpack.c.bf16 %v1012, %v1011
        %v1028 = vpack.c.bf16 %v1014, %v1013
        %v1029 = vpack.c.bf16 %v1016, %v1015
        %v1030 = vpack.c.bf16 %v1018, %v1017
        %v1031 = vpack.c.bf16 %v1020, %v1019
        %v1032 = vpack.c.bf16 %v1022, %v1021
        %v1034 = vsel %vm251, %v1025, 0
        %v1037 = vsel %vm251, %v1026, 0
        %v1040 = vsel %vm251, %v1027, 0
        %v1043 = vsel %vm251, %v1028, 0
        %v1046 = vsel %vm251, %v1029, 0
        %v1049 = vsel %vm251, %v1030, 0
        %v1052 = vsel %vm251, %v1031, 0
        %v1055 = vsel %vm251, %v1032, 0
        %v1058 = vsel %vm276, %v1024, 0
        %1060 = vmatpush.bf16.msra.mxu0 0
        %1061 = vmatpush.bf16.msra.mxu0 0
        %1062 = vmatpush.bf16.msra.mxu0 0
        %1063 = vmatpush.bf16.msra.mxu0 0
        %1064 = vmatpush.bf16.msra.mxu0 0
        %1065 = vmatpush.bf16.msra.mxu0 0
        %1066 = vmatpush.bf16.msra.mxu0 0
        %1067 = vmatpush.bf16.msra.mxu0 %v1058
        %1068 = vmatmul.bf16.gmra.mxu0 %v1034
        %v1069 = vpop.f32.mrf.mxu0
        %v1070 = vadd.f32 0.0, %v1069
        %v1071 = vpop.f32.mrf.mxu0
        %v1072 = vadd.f32 0.0, %v1071
        %1073 = vmatmul.bf16.gmra.mxu0 %v1037
        %v1074 = vpop.f32.mrf.mxu0
        %v1075 = vadd.f32 0.0, %v1074
        %v1076 = vpop.f32.mrf.mxu0
        %v1077 = vadd.f32 0.0, %v1076
        %1078 = vmatmul.bf16.gmra.mxu0 %v1040
        %v1079 = vpop.f32.mrf.mxu0
        %v1080 = vadd.f32 0.0, %v1079
        %v1081 = vpop.f32.mrf.mxu0
        %v1082 = vadd.f32 0.0, %v1081
        %1083 = vmatmul.bf16.gmra.mxu0 %v1043
        %v1084 = vpop.f32.mrf.mxu0
        %v1085 = vadd.f32 0.0, %v1084
        %v1086 = vpop.f32.mrf.mxu0
        %v1087 = vadd.f32 0.0, %v1086
        %1088 = vmatmul.bf16.gmra.mxu0 %v1046
        %v1089 = vpop.f32.mrf.mxu0
        %v1090 = vadd.f32 0.0, %v1089
        %v1091 = vpop.f32.mrf.mxu0
        %v1092 = vadd.f32 0.0, %v1091
        %1093 = vmatmul.bf16.gmra.mxu0 %v1049
        %v1094 = vpop.f32.mrf.mxu0
        %v1095 = vadd.f32 0.0, %v1094
        %v1096 = vpop.f32.mrf.mxu0
        %v1097 = vadd.f32 0.0, %v1096
        %1098 = vmatmul.bf16.gmra.mxu0 %v1052
        %v1099 = vpop.f32.mrf.mxu0
        %v1100 = vadd.f32 0.0, %v1099
        %v1101 = vpop.f32.mrf.mxu0
        %v1102 = vadd.f32 0.0, %v1101
        %1103 = vmatmul.bf16.gmra.mxu0 %v1055
        %v1104 = vpop.f32.mrf.mxu0
        %v1105 = vadd.f32 0.0, %v1104
        %v1106 = vpop.f32.mrf.mxu0
        %v1107 = vadd.f32 0.0, %v1106
        %1108 = vdwg.mxu0
        %v1109 = vadd.f32 %v989, %v1070
        %v1110 = vadd.f32 %v990, %v1072
        %v1111 = vadd.f32 %v991, %v1075
        %v1112 = vadd.f32 %v992, %v1077
        %v1113 = vadd.f32 %v993, %v1080
        %v1114 = vadd.f32 %v994, %v1082
        %v1115 = vadd.f32 %v995, %v1085
        %v1116 = vadd.f32 %v996, %v1087
        %v1117 = vadd.f32 %v997, %v1090
        %v1118 = vadd.f32 %v998, %v1092
        %v1119 = vadd.f32 %v999, %v1095
        %v1120 = vadd.f32 %v1000, %v1097
        %v1121 = vadd.f32 %v1001, %v1100
        %v1122 = vadd.f32 %v1002, %v1102
        %v1123 = vadd.f32 %v1003, %v1105
        %v1124 = vadd.f32 %v1004, %v1107
        %s1125 = sadd.s32 %s196, 38
        %s1126 = scalar_lea.vmem %s0, %s1125
        %v1127 = vld [vmem:[%s1126] sm:$0xff]
        %v1128 = vld [vmem:[%s1126 + $0x8] sm:$0xff]
        %v1129 = vld [vmem:[%s1126 + $0x10] sm:$0xff]
        %v1130 = vld [vmem:[%s1126 + $0x18] sm:$0xff]
        %v1131 = vld [vmem:[%s1126 + $0x20] sm:$0xff]
        %v1132 = vld [vmem:[%s1126 + $0x28] sm:$0xff]
        %v1133 = vld [vmem:[%s1126 + $0x30] sm:$0xff]
        %v1134 = vld [vmem:[%s1126 + $0x38] sm:$0xff]
        %v1135 = vld [vmem:[%s1126 + $0x40] sm:$0xff]
        %v1136 = vld [vmem:[%s1126 + $0x48] sm:$0xff]
        %v1137 = vld [vmem:[%s1126 + $0x50] sm:$0xff]
        %v1138 = vld [vmem:[%s1126 + $0x58] sm:$0xff]
        %v1139 = vld [vmem:[%s1126 + $0x60] sm:$0xff]
        %v1140 = vld [vmem:[%s1126 + $0x68] sm:$0xff]
        %v1141 = vld [vmem:[%s1126 + $0x70] sm:$0xff]
        %v1142 = vld [vmem:[%s1126 + $0x78] sm:$0xff]
        %s1143 = scalar_lea.vmem %s190, 16
        %v1144 = vld [vmem:[%s1143] sm:$0x3]
        %v1145 = vpack.c.bf16 %v1128, %v1127
        %v1146 = vpack.c.bf16 %v1130, %v1129
        %v1147 = vpack.c.bf16 %v1132, %v1131
        %v1148 = vpack.c.bf16 %v1134, %v1133
        %v1149 = vpack.c.bf16 %v1136, %v1135
        %v1150 = vpack.c.bf16 %v1138, %v1137
        %v1151 = vpack.c.bf16 %v1140, %v1139
        %v1152 = vpack.c.bf16 %v1142, %v1141
        %v1154 = vsel %vm251, %v1145, 0
        %v1157 = vsel %vm251, %v1146, 0
        %v1160 = vsel %vm251, %v1147, 0
        %v1163 = vsel %vm251, %v1148, 0
        %v1166 = vsel %vm251, %v1149, 0
        %v1169 = vsel %vm251, %v1150, 0
        %v1172 = vsel %vm251, %v1151, 0
        %v1175 = vsel %vm251, %v1152, 0
        %v1178 = vsel %vm276, %v1144, 0
        %1180 = vmatpush.bf16.msra.mxu0 0
        %1181 = vmatpush.bf16.msra.mxu0 0
        %1182 = vmatpush.bf16.msra.mxu0 0
        %1183 = vmatpush.bf16.msra.mxu0 0
        %1184 = vmatpush.bf16.msra.mxu0 0
        %1185 = vmatpush.bf16.msra.mxu0 0
        %1186 = vmatpush.bf16.msra.mxu0 0
        %1187 = vmatpush.bf16.msra.mxu0 %v1178
        %1188 = vmatmul.bf16.gmra.mxu0 %v1154
        %v1189 = vpop.f32.mrf.mxu0
        %v1190 = vadd.f32 0.0, %v1189
        %v1191 = vpop.f32.mrf.mxu0
        %v1192 = vadd.f32 0.0, %v1191
        %1193 = vmatmul.bf16.gmra.mxu0 %v1157
        %v1194 = vpop.f32.mrf.mxu0
        %v1195 = vadd.f32 0.0, %v1194
        %v1196 = vpop.f32.mrf.mxu0
        %v1197 = vadd.f32 0.0, %v1196
        %1198 = vmatmul.bf16.gmra.mxu0 %v1160
        %v1199 = vpop.f32.mrf.mxu0
        %v1200 = vadd.f32 0.0, %v1199
        %v1201 = vpop.f32.mrf.mxu0
        %v1202 = vadd.f32 0.0, %v1201
        %1203 = vmatmul.bf16.gmra.mxu0 %v1163
        %v1204 = vpop.f32.mrf.mxu0
        %v1205 = vadd.f32 0.0, %v1204
        %v1206 = vpop.f32.mrf.mxu0
        %v1207 = vadd.f32 0.0, %v1206
        %1208 = vmatmul.bf16.gmra.mxu0 %v1166
        %v1209 = vpop.f32.mrf.mxu0
        %v1210 = vadd.f32 0.0, %v1209
        %v1211 = vpop.f32.mrf.mxu0
        %v1212 = vadd.f32 0.0, %v1211
        %1213 = vmatmul.bf16.gmra.mxu0 %v1169
        %v1214 = vpop.f32.mrf.mxu0
        %v1215 = vadd.f32 0.0, %v1214
        %v1216 = vpop.f32.mrf.mxu0
        %v1217 = vadd.f32 0.0, %v1216
        %1218 = vmatmul.bf16.gmra.mxu0 %v1172
        %v1219 = vpop.f32.mrf.mxu0
        %v1220 = vadd.f32 0.0, %v1219
        %v1221 = vpop.f32.mrf.mxu0
        %v1222 = vadd.f32 0.0, %v1221
        %1223 = vmatmul.bf16.gmra.mxu0 %v1175
        %v1224 = vpop.f32.mrf.mxu0
        %v1225 = vadd.f32 0.0, %v1224
        %v1226 = vpop.f32.mrf.mxu0
        %v1227 = vadd.f32 0.0, %v1226
        %1228 = vdwg.mxu0
        %v1229 = vadd.f32 %v1109, %v1190
        %v1230 = vadd.f32 %v1110, %v1192
        %v1231 = vadd.f32 %v1111, %v1195
        %v1232 = vadd.f32 %v1112, %v1197
        %v1233 = vadd.f32 %v1113, %v1200
        %v1234 = vadd.f32 %v1114, %v1202
        %v1235 = vadd.f32 %v1115, %v1205
        %v1236 = vadd.f32 %v1116, %v1207
        %v1237 = vadd.f32 %v1117, %v1210
        %v1238 = vadd.f32 %v1118, %v1212
        %v1239 = vadd.f32 %v1119, %v1215
        %v1240 = vadd.f32 %v1120, %v1217
        %v1241 = vadd.f32 %v1121, %v1220
        %v1242 = vadd.f32 %v1122, %v1222
        %v1243 = vadd.f32 %v1123, %v1225
        %v1244 = vadd.f32 %v1124, %v1227
        %v1245 = vld [vmem:[%s193] sm:$0x1]
        %v1247 = vperm.slane %v1245, 0
        %v1249 = vadd.f32 %v1229, %v1247
        %v1250 = vadd.f32 %v1230, %v1247
        %v1251 = vadd.f32 %v1231, %v1247
        %v1252 = vadd.f32 %v1232, %v1247
        %v1253 = vadd.f32 %v1233, %v1247
        %v1254 = vadd.f32 %v1234, %v1247
        %v1255 = vadd.f32 %v1235, %v1247
        %v1256 = vadd.f32 %v1236, %v1247
        %v1257 = vadd.f32 %v1237, %v1247
        %v1258 = vadd.f32 %v1238, %v1247
        %v1259 = vadd.f32 %v1239, %v1247
        %v1260 = vadd.f32 %v1240, %v1247
        %v1261 = vadd.f32 %v1241, %v1247
        %v1262 = vadd.f32 %v1242, %v1247
        %v1263 = vadd.f32 %v1243, %v1247
        %v1264 = vadd.f32 %v1244, %v1247
        %v1265 = vmax.f32 %v1249, 0.0
        %v1266 = vmax.f32 %v1250, 0.0
        %v1267 = vmax.f32 %v1251, 0.0
        %v1268 = vmax.f32 %v1252, 0.0
        %v1269 = vmax.f32 %v1253, 0.0
        %v1270 = vmax.f32 %v1254, 0.0
        %v1271 = vmax.f32 %v1255, 0.0
        %v1272 = vmax.f32 %v1256, 0.0
        %v1273 = vmax.f32 %v1257, 0.0
        %v1274 = vmax.f32 %v1258, 0.0
        %v1275 = vmax.f32 %v1259, 0.0
        %v1276 = vmax.f32 %v1260, 0.0
        %v1277 = vmax.f32 %v1261, 0.0
        %v1278 = vmax.f32 %v1262, 0.0
        %v1279 = vmax.f32 %v1263, 0.0
        %v1280 = vmax.f32 %v1264, 0.0
        %1281 = vst [vmem:[%s186] sm:$0xff] %v1265
        %1282 = vst [vmem:[%s186 + $0x8] sm:$0xff] %v1266
        %1283 = vst [vmem:[%s186 + $0x10] sm:$0xff] %v1267
        %1284 = vst [vmem:[%s186 + $0x18] sm:$0xff] %v1268
        %1285 = vst [vmem:[%s186 + $0x20] sm:$0xff] %v1269
        %1286 = vst [vmem:[%s186 + $0x28] sm:$0xff] %v1270
        %1287 = vst [vmem:[%s186 + $0x30] sm:$0xff] %v1271
        %1288 = vst [vmem:[%s186 + $0x38] sm:$0xff] %v1272
        %1289 = vst [vmem:[%s186 + $0x40] sm:$0xff] %v1273
        %1290 = vst [vmem:[%s186 + $0x48] sm:$0xff] %v1274
        %1291 = vst [vmem:[%s186 + $0x50] sm:$0xff] %v1275
        %1292 = vst [vmem:[%s186 + $0x58] sm:$0xff] %v1276
        %1293 = vst [vmem:[%s186 + $0x60] sm:$0xff] %v1277
        %1294 = vst [vmem:[%s186 + $0x68] sm:$0xff] %v1278
        %1295 = vst [vmem:[%s186 + $0x70] sm:$0xff] %v1279
        %1296 = vst [vmem:[%s186 + $0x78] sm:$0xff] %v1280
        %s1297 = sand.u32 %s112, 1
        %s1298 = scalar_lea.sflag [#allocation3], %s1297
        %s1299 = sand.u32 %s112, 1
        %s1300 = smul.addr %s1299, 128
        %s1301 = scalar_lea.vmem [#allocation2], %s1300
        // Predicated region
        $region33: #{tpu_custom_call.1} parent=31 // pred_check
          %p1302 = pneg %p122
        $region34: #{tpu_custom_call.1} parent=31 // pred_check_branch
          %1304 = sbr.rel (%p1302) target = $region36
        $region35: #{tpu_custom_call.1} parent=31 // pred_region
          %s1305 = smul.u32 16, %s22
          %1307 = vsyncadd %s1298, 0
          %s1308 = sadd.s32 %s21, %s1305
          %s1309 = smul.addr %s1308, 8
          %s1310 = scalar_lea.hbm %s3, %s1309
          %s1311 = sshll.u32 %s1301, 4
          %s1312 = int_to_ptr.vmem [resolvable:$true] %s1311
          %s1313 = sshll.u32 %s1310, 4
          %s1314 = int_to_ptr.hbm [resolvable:$true] %s1313
          %1319 = dma.vmem_to_hbm [thread:$0]  %s1312, 2048, %s1314, %s1298, 128, 128, 8
        $region36: #{tpu_custom_call.1} parent=31 // pred_fallthru
          _
      $region32: #{tpu_custom_call.1} parent=5 // pred_fallthru
        _
      %p1320 = scmp.le.s32.totalorder 2, %s12
      // Predicated region
      $region37: #{tpu_custom_call.1} parent=5 // pred_check
        %p1321 = pneg %p1320
      $region38: #{tpu_custom_call.1} parent=5 // pred_check_branch
        %1323 = sbr.rel (%p1321) target = $region40
      $region39: #{tpu_custom_call.1} parent=5 // pred_region
        %s1324 = ssub.s32 %s12, 2
        // Predicated region
        $region41: #{tpu_custom_call.1} parent=39 // pred_check
          %p1325 = pneg %p128
        $region42: #{tpu_custom_call.1} parent=39 // pred_check_branch
          %1327 = sbr.rel (%p1325) target = $region44
        $region43: #{tpu_custom_call.1} parent=39 // pred_region
          %s1328 = sand.u32 %s113, 1
          %s1329 = scalar_lea.sflag [#allocation3], %s1328
          %s1330 = sand.u32 %s113, 1
          %s1331 = smul.addr %s1330, 128
          %s1332 = scalar_lea.vmem [#allocation2], %s1331
          %1334 = dma.done %s1329, 2048
        $region44: #{tpu_custom_call.1} parent=39 // pred_fallthru
          _
      $region40: #{tpu_custom_call.1} parent=5 // pred_fallthru
        _
    $region6: #{tpu_custom_call.1} parent=1 // loop_footer
      %s16 = sadd.s32 1, %s12
    $region7: #{tpu_custom_call.1} parent=1 // loop_footer_branch
      %11 = sbr.rel target = $region3
    $region8: #{tpu_custom_call.1} parent=1 // loop_exit
      _
    %1335 = vsyncpa [#allocation3], 1
    %s1336 = scalar_lea.sflag [#allocation3], 1
    %1337 = vsyncpa %s1336, 1

</llo_original>
